<compile_context>
chip_gen: v7x
topology: tpu7x:2x2x1
jax: 0.10.0
libtpu: 0.0.40
codegen_flags: <defaults>
</compile_context>

<pallas_src>
import functools

import jax
import jax.numpy as jnp
from jax import lax
from jax.experimental import pallas as pl
from jax.experimental.pallas import tpu as pltpu

# ---------------- configuration (mirrors BaseTransform.__init__ at small shapes) -------------
IN_CHANNELS = 4
OUT_CHANNELS = 16                 # self.C
IMAGE_SIZE = (32, 32)             # (iH, iW)
FEATURE_SIZE = (4, 4)             # (fH, fW)
XBOUND = (-8.0, 8.0, 1.0)
YBOUND = (-8.0, 8.0, 1.0)
ZBOUND = (-8.0, 8.0, 16.0)
DBOUND = (1.0, 5.0, 1.0)


def gen_dx_bx(xbound, ybound, zbound):
    dx = jnp.array([row[2] for row in (xbound, ybound, zbound)], jnp.float32)
    bx = jnp.array([row[0] + row[2] / 2.0 for row in (xbound, ybound, zbound)], jnp.float32)
    nx = [int((row[1] - row[0]) / row[2]) for row in (xbound, ybound, zbound)]
    return dx, bx, nx


DX, BX, NX_LIST = gen_dx_bx(XBOUND, YBOUND, ZBOUND)
NX, NY, NZ = NX_LIST                                   # 16, 16, 1
LB = tuple(float(v) for v in (BX - DX / 2.0))          # lower bounds (= xbound[0], ...)
DXF = tuple(float(v) for v in DX)

# ---------------- frustum (create_frustum), flattened per camera in (fH, fW, D) order --------
_iH, _iW = IMAGE_SIZE
_fH, _fW = FEATURE_SIZE
_ds_vals = jnp.arange(DBOUND[0], DBOUND[1], DBOUND[2], dtype=jnp.float32)   # (D,)
D = int(_ds_vals.shape[0])
_xs_vals = jnp.linspace(0.0, _iW - 1, _fW, dtype=jnp.float32)
_ys_vals = jnp.linspace(0.0, _iH - 1, _fH, dtype=jnp.float32)
P_CAM = _fH * _fW * D                                   # points per camera
N_SCAL = 36                                             # per-camera transform scalars

XS_PLANE = jnp.broadcast_to(_xs_vals[None, :, None], (_fH, _fW, D)).reshape(1, P_CAM)
YS_PLANE = jnp.broadcast_to(_ys_vals[:, None, None], (_fH, _fW, D)).reshape(1, P_CAM)
DS_PLANE = jnp.broadcast_to(_ds_vals[None, None, :], (_fH, _fW, D)).reshape(1, P_CAM)


# =========================== kernel 1: geometry + voxelization + flat BEV row ================
def _geom_kernel(scal_ref, xs_ref, ys_ref, ds_ref, rows_ref, *,
                 n_cams, cams_per_batch, lb, dx, nx, ny, nz):
    # scal_ref: SMEM (n_cams*36,) f32 -- per-camera transform scalars, read as true scalars.
    # xs/ys/ds: VMEM (1, P_CAM) f32   -- frustum, shared by all cameras.
    # rows_ref: VMEM (n_cams, P_CAM) int32 -- flat BEV row index or -1 sentinel (dropped).
    xs = xs_ref[...]
    ys = ys_ref[...]
    ds = ds_ref[...]

    for cam in range(n_cams):                # static unroll; scalar-from-SMEM splats are free
        def s(k, _c=cam):
            return scal_ref[_c * N_SCAL + k]

        # points = frustum - post_trans
        x0 = xs - s(18)
        y0 = ys - s(19)
        d0 = ds - s(20)
        # points = inverse(post_rots) @ points
        x1 = s(0) * x0 + s(1) * y0 + s(2) * d0
        y1 = s(3) * x0 + s(4) * y0 + s(5) * d0
        d1 = s(6) * x0 + s(7) * y0 + s(8) * d0
        # un-project: scale pixel coords by depth
        x2 = x1 * d1
        y2 = y1 * d1
        d2 = d1
        # points = (cam2lidar_rot @ inv(intrins)) @ points + cam2lidar_trans
        x3 = s(9) * x2 + s(10) * y2 + s(11) * d2 + s(21)
        y3 = s(12) * x2 + s(13) * y2 + s(14) * d2 + s(22)
        z3 = s(15) * x2 + s(16) * y2 + s(17) * d2 + s(23)
        # lidar augmentation: extra_rots @ points + extra_trans
        gx = s(24) * x3 + s(25) * y3 + s(26) * z3 + s(33)
        gy = s(27) * x3 + s(28) * y3 + s(29) * z3 + s(34)
        gz = s(30) * x3 + s(31) * y3 + s(32) * z3 + s(35)

        # ((geom - (bx - dx/2)) / dx).long() -> trunc-toward-zero, same as torch .long()
        xi = ((gx - lb[0]) / dx[0]).astype(jnp.int32)
        yi = ((gy - lb[1]) / dx[1]).astype(jnp.int32)
        zi = ((gz - lb[2]) / dx[2]).astype(jnp.int32)

        bi = cam // cams_per_batch           # python int: batch index of this camera
        kept = ((xi >= 0) & (xi < nx) & (yi >= 0) & (yi < ny) & (zi >= 0) & (zi < nz))
        row = ((bi * nz + zi) * nx + xi) * ny + yi       # flat index into (B, NZ, NX, NY)
        rows_ref[pl.ds(cam, 1), :] = jnp.where(kept, row, -1)


def compute_bev_rows(scal_flat, B, N):
    # Single invocation; at production P_CAM the whole output row is lane-dense per camera
    # and a "parallel" camera grid axis can be reintroduced for the v7x TC split.
    kern = functools.partial(_geom_kernel, n_cams=B * N, cams_per_batch=N,
                             lb=LB, dx=DXF, nx=NX, ny=NY, nz=NZ)
    rows = pl.pallas_call(
        kern,
        in_specs=[pl.BlockSpec(memory_space=pltpu.MemorySpace.SMEM),
                  pl.BlockSpec(memory_space=pltpu.MemorySpace.VMEM),
                  pl.BlockSpec(memory_space=pltpu.MemorySpace.VMEM),
                  pl.BlockSpec(memory_space=pltpu.MemorySpace.VMEM)],
        out_shape=jax.ShapeDtypeStruct((B * N, P_CAM), jnp.int32),
    )(scal_flat, XS_PLANE, YS_PLANE, DS_PLANE)
    # flat point order (B, N, fH, fW, D) -> one int32 row id per point, grouped per pixel
    return rows.reshape(B * N * _fH * _fW, D)


# ================= kernel 2: fused (pool-folded projection) + BEV one-hot pool ===============
def _proj_pool_kernel(xT_ref, wT_ref, bT_ref, rows_ref, iota_ref, out_ref, *, d_planes, c_out):
    t = pl.program_id(1)

    @pl.when(t == 0)
    def _init():
        out_ref[...] = jnp.zeros_like(out_ref)

    # MXU #1: pool-folded projection, kept transposed so pixels stay on lanes: (D*C, tpix) f32.
    proj_t = (jnp.dot(wT_ref[...], xT_ref[...], preferred_element_type=jnp.float32)
              + bT_ref[...])

    rows = rows_ref[...]             # (tpix, D) int32, -1 = out-of-bounds (never matches iota)
    iota = iota_ref[...]             # (tpix, n_rows) int32, resident constant (fetched once)

    # MXU #2: one-hot scatter-add per depth plane into the (C, n_rows) accumulator.
    # One int32 compare + one bf16 convert per plane; the {0,1} one-hot is exact in bf16.
    # TODO(synk): keep feats in f32 (highest precision) if bit-exact parity with the torch
    # fp32 scatter-add is required.
    part = jnp.zeros(out_ref.shape, jnp.float32)
    for d in range(d_planes):
        feats_dt = proj_t[d * c_out:(d + 1) * c_out, :].astype(jnp.bfloat16)   # (C, tpix)
        onehot_d = (rows[:, d:d + 1] == iota).astype(jnp.bfloat16)             # (tpix, n_rows)
        part = part + jnp.dot(feats_dt, onehot_d, preferred_element_type=jnp.float32)
    out_ref[...] += part


def _im2col_T(img):
    # (B, N, cin, iH, iW) -> (K = cin*ph*pw, Npix = B*N*fH*fW) bf16 pixel-patch matrix,
    # transposed so the pixel axis lands on lanes inside the kernel.
    # TODO(synk): at production sizes fold this transpose into the kernel input DMA
    # (CompilerParams(allow_input_fusion=...)) to save one image-sized HBM round trip.
    B, N, cin, ih, iw = img.shape
    fh, fw = FEATURE_SIZE
    ph, pw = ih // fh, iw // fw
    x = img.reshape(B, N, cin, fh, ph, fw, pw)
    x = jnp.transpose(x, (2, 4, 6, 0, 1, 3, 5))            # (cin, ph, pw, B, N, fh, fw)
    return x.reshape(cin * ph * pw, B * N * fh * fw).astype(jnp.bfloat16)


def _pool_tiling(npix):
    # v7x: shard the point reduction over both TensorCores via a leading "parallel" axis with
    # one partial accumulator per slot; this is just a serial loop (harmless) on v5e / v6e.
    ncores = 2 if npix % 2 == 0 else 1
    ppc = npix // ncores
    # 128-pixel tiles (= 128*D points/step) when they divide evenly -> lane-dense,
    # (8,128)-aligned blocks; otherwise one whole-range tile per slot (demo sizes, no padding).
    tpix = 128 if ppc % 128 == 0 else ppc
    return ncores, ppc, tpix, ppc // tpix


def fused_cam_feats_bev_pool(params, img, rows, B):
    # TODO(synk): BaseTransform.get_cam_feats raises NotImplementedError in the base class;
    # the projection here is a deterministic stand-in: an 8x8 average pool folded into a
    # per-pixel linear projection to D*C channels (K = C_in*8*8 = 256 fills the MXU).
    xT = _im2col_T(img)                                    # (K, Npix) bf16
    K, npix = xT.shape
    n_rows = B * NZ * NX * NY
    C = OUT_CHANNELS

    ncores, ppc, tpix, n_tiles = _pool_tiling(npix)
    xTc = jnp.transpose(xT.reshape(K, ncores, ppc), (1, 0, 2))      # (ncores, K, ppc)
    rows_c = rows.reshape(ncores, ppc, D)                           # same contiguous pixel split
    iota = lax.broadcasted_iota(jnp.int32, (tpix, n_rows), 1)       # hoisted, resident
    wT = params["wT"]                                               # (D*C, K) bf16
    bT = params["bT"]                                               # (D*C, 1) f32
    DC = wT.shape[0]

    kern = functools.partial(_proj_pool_kernel, d_planes=D, c_out=C)
    partials = pl.pallas_call(
        kern,
        grid=(ncores, n_tiles),
        in_specs=[
            pl.BlockSpec((None, K, tpix), lambda c, t: (c, 0, t)),
            pl.BlockSpec((DC, K), lambda c, t: (0, 0)),             # weight resident
            pl.BlockSpec((DC, 1), lambda c, t: (0, 0)),             # bias resident
            pl.BlockSpec((None, tpix, D), lambda c, t: (c, t, 0)),
            pl.BlockSpec((tpix, n_rows), lambda c, t: (0, 0)),      # iota resident
        ],
        out_specs=pl.BlockSpec((None, C, n_rows), lambda c, t: (c, 0, 0)),
        out_shape=jax.ShapeDtypeStruct((ncores, C, n_rows), jnp.float32),
        compiler_params=pltpu.CompilerParams(
            dimension_semantics=("parallel", "arbitrary")),
    )(xTc, wT, bT, rows_c, iota)

    # sum per-slot partials, then (C, B, NZ, NX, NY) -> (B, NZ*C, NX, NY):
    # z-major channel blocks == torch.cat(x.unbind(2), 1) in the reference.
    bev_t = partials.sum(axis=0).reshape(C, B, NZ, NX, NY)
    return jnp.transpose(bev_t, (1, 2, 0, 3, 4)).reshape(B, NZ * C, NX, NY)


# =========================== forward (BaseTransform.forward) =================================
def base_transform_forward(params, img, points, radar, camera2ego, lidar2ego, lidar2camera,
                           lidar2image, camera_intrinsics, camera2lidar, img_aug_matrix,
                           lidar_aug_matrix):
    B, N = img.shape[0], img.shape[1]

    intrins = camera_intrinsics[..., :3, :3]
    post_rots = img_aug_matrix[..., :3, :3]
    post_trans = img_aug_matrix[..., :3, 3]
    camera2lidar_rots = camera2lidar[..., :3, :3]
    camera2lidar_trans = camera2lidar[..., :3, 3]
    extra_rots = lidar_aug_matrix[..., :3, :3]
    extra_trans = lidar_aug_matrix[..., :3, 3]

    # glue: tiny batched 3x3 inverses & combine matrices in plain JAX
    inv_post_rots = jnp.linalg.inv(post_rots)
    combine = camera2lidar_rots @ jnp.linalg.inv(intrins)

    # pack the 36 per-camera transform scalars (flat 1-D -> SMEM in the geometry kernel)
    scal = jnp.concatenate([
        inv_post_rots.reshape(B, N, 9),
        combine.reshape(B, N, 9),
        post_trans.reshape(B, N, 3),
        camera2lidar_trans.reshape(B, N, 3),
        jnp.broadcast_to(extra_rots.reshape(B, 1, 9), (B, N, 9)),
        jnp.broadcast_to(extra_trans.reshape(B, 1, 3), (B, N, 3)),
    ], axis=-1).reshape(B * N * N_SCAL).astype(jnp.float32)

    rows = compute_bev_rows(scal, B, N)                    # (Npix, D) int32, -1 = dropped
    return fused_cam_feats_bev_pool(params, img, rows, B)  # (B, C*NZ, NX, NY)


# ======================================= demo ================================================
if __name__ == "__main__":
    key = jax.random.PRNGKey(0)
    kimg, kw = jax.random.split(key)

    B, N = 2, 2
    iH, iW = IMAGE_SIZE
    img = jax.random.normal(kimg, (B, N, IN_CHANNELS, iH, iW), jnp.float32)
    points = jnp.zeros((B, 64, 5), jnp.float32)    # unused by the base forward
    radar = jnp.zeros((B, 32, 7), jnp.float32)     # unused by the base forward

    def make44(rot, trans):
        m = jnp.zeros((4, 4), jnp.float32)
        m = m.at[:3, :3].set(jnp.asarray(rot, jnp.float32))
        m = m.at[:3, 3].set(jnp.asarray(trans, jnp.float32))
        return m.at[3, 3].set(1.0)

    eye4 = jnp.eye(4, dtype=jnp.float32)
    intrin = make44([[16., 0., 16.], [0., 16., 16.], [0., 0., 1.]], [0., 0., 0.])
    cam2lidar = make44([[0., 0., 1.], [-1., 0., 0.], [0., -1., 0.]], [0.5, 0.2, 1.0])
    img_aug = make44([[0.9, 0., 0.], [0., 0.9, 0.], [0., 0., 1.]], [1.5, -0.5, 0.0])
    th = 0.1
    lidar_aug = make44([[jnp.cos(th), -jnp.sin(th), 0.],
                        [jnp.sin(th), jnp.cos(th), 0.],
                        [0., 0., 1.]], [0.3, -0.2, 0.1])

    camera_intrinsics = jnp.broadcast_to(intrin, (B, N, 4, 4))
    camera2lidar = jnp.broadcast_to(cam2lidar, (B, N, 4, 4))
    img_aug_matrix = jnp.broadcast_to(img_aug, (B, N, 4, 4))
    lidar_aug_matrix = jnp.broadcast_to(lidar_aug, (B, 4, 4))
    camera2ego = jnp.broadcast_to(eye4, (B, N, 4, 4))
    lidar2ego = jnp.broadcast_to(eye4, (B, 4, 4))
    lidar2camera = jnp.broadcast_to(eye4, (B, N, 4, 4))
    lidar2image = jnp.broadcast_to(eye4, (B, N, 4, 4))

    # deterministic synthetic parameters for the get_cam_feats stand-in:
    # base weight (cin, D*C); fold the (ph*pw) average pool into the projection weight
    # (K = cin*ph*pw = 256) and store it transposed (D*C, K) so the fused kernel's
    # projection output keeps pixels on lanes.
    w = jax.random.normal(kw, (IN_CHANNELS, D * OUT_CHANNELS), jnp.float32) * 0.1
    ph, pw = iH // FEATURE_SIZE[0], iW // FEATURE_SIZE[1]
    w_fused = jnp.repeat(w, ph * pw, axis=0) / float(ph * pw)          # (K, D*C)
    params = {"wT": w_fused.T.astype(jnp.bfloat16),                    # (D*C, K) bf16
              "bT": jnp.zeros((D * OUT_CHANNELS, 1), jnp.float32)}     # (D*C, 1) f32

    out = base_transform_forward(params, img, points, radar, camera2ego, lidar2ego,
                                 lidar2camera, lidar2image, camera_intrinsics,
                                 camera2lidar, img_aug_matrix, lidar_aug_matrix)
    out = jax.block_until_ready(out)
    assert out.shape == (B, OUT_CHANNELS * NZ, NX, NY), out.shape
    assert bool(jnp.isfinite(out).all())
    print("KERNEL_OK")
</pallas_src>

<mosaic_0001>
module attributes {stable_mosaic.version = 11 : i64} {
  func.func @_geom_kernel(%arg0: memref<144xf32, #tpu.memory_space<smem>>, %arg1: memref<1x64xf32, #tpu.memory_space<vmem>>, %arg2: memref<1x64xf32, #tpu.memory_space<vmem>>, %arg3: memref<1x64xf32, #tpu.memory_space<vmem>>, %arg4: memref<4x64xi32, #tpu.memory_space<vmem>>) attributes {dimension_semantics = [], scalar_prefetch = 0 : i64, scratch_operands = 0 : i64, tpu.core_type = #tpu.core_type<tc>} {
    %c0 = arith.constant 0 : index
    %c0_0 = arith.constant 0 : index
    %0 = vector.load %arg1[%c0, %c0_0] : memref<1x64xf32, #tpu.memory_space<vmem>>, vector<1x64xf32>
    %c0_1 = arith.constant 0 : index
    %c0_2 = arith.constant 0 : index
    %1 = vector.load %arg2[%c0_1, %c0_2] : memref<1x64xf32, #tpu.memory_space<vmem>>, vector<1x64xf32>
    %c0_3 = arith.constant 0 : index
    %c0_4 = arith.constant 0 : index
    %2 = vector.load %arg3[%c0_3, %c0_4] : memref<1x64xf32, #tpu.memory_space<vmem>>, vector<1x64xf32>
    %c18 = arith.constant 18 : index
    %3 = memref.load %arg0[%c18] : memref<144xf32, #tpu.memory_space<smem>>
    %4 = vector.broadcast %3 : f32 to vector<1x64xf32>
    %5 = arith.subf %0, %4 : vector<1x64xf32>
    %c19 = arith.constant 19 : index
    %6 = memref.load %arg0[%c19] : memref<144xf32, #tpu.memory_space<smem>>
    %7 = vector.broadcast %6 : f32 to vector<1x64xf32>
    %8 = arith.subf %1, %7 : vector<1x64xf32>
    %c20 = arith.constant 20 : index
    %9 = memref.load %arg0[%c20] : memref<144xf32, #tpu.memory_space<smem>>
    %10 = vector.broadcast %9 : f32 to vector<1x64xf32>
    %11 = arith.subf %2, %10 : vector<1x64xf32>
    %c0_5 = arith.constant 0 : index
    %12 = memref.load %arg0[%c0_5] : memref<144xf32, #tpu.memory_space<smem>>
    %13 = vector.broadcast %12 : f32 to vector<1x64xf32>
    %14 = arith.mulf %13, %5 : vector<1x64xf32>
    %c1 = arith.constant 1 : index
    %15 = memref.load %arg0[%c1] : memref<144xf32, #tpu.memory_space<smem>>
    %16 = vector.broadcast %15 : f32 to vector<1x64xf32>
    %17 = arith.mulf %16, %8 : vector<1x64xf32>
    %18 = arith.addf %14, %17 : vector<1x64xf32>
    %c2 = arith.constant 2 : index
    %19 = memref.load %arg0[%c2] : memref<144xf32, #tpu.memory_space<smem>>
    %20 = vector.broadcast %19 : f32 to vector<1x64xf32>
    %21 = arith.mulf %20, %11 : vector<1x64xf32>
    %22 = arith.addf %18, %21 : vector<1x64xf32>
    %c3 = arith.constant 3 : index
    %23 = memref.load %arg0[%c3] : memref<144xf32, #tpu.memory_space<smem>>
    %24 = vector.broadcast %23 : f32 to vector<1x64xf32>
    %25 = arith.mulf %24, %5 : vector<1x64xf32>
    %c4 = arith.constant 4 : index
    %26 = memref.load %arg0[%c4] : memref<144xf32, #tpu.memory_space<smem>>
    %27 = vector.broadcast %26 : f32 to vector<1x64xf32>
    %28 = arith.mulf %27, %8 : vector<1x64xf32>
    %29 = arith.addf %25, %28 : vector<1x64xf32>
    %c5 = arith.constant 5 : index
    %30 = memref.load %arg0[%c5] : memref<144xf32, #tpu.memory_space<smem>>
    %31 = vector.broadcast %30 : f32 to vector<1x64xf32>
    %32 = arith.mulf %31, %11 : vector<1x64xf32>
    %33 = arith.addf %29, %32 : vector<1x64xf32>
    %c6 = arith.constant 6 : index
    %34 = memref.load %arg0[%c6] : memref<144xf32, #tpu.memory_space<smem>>
    %35 = vector.broadcast %34 : f32 to vector<1x64xf32>
    %36 = arith.mulf %35, %5 : vector<1x64xf32>
    %c7 = arith.constant 7 : index
    %37 = memref.load %arg0[%c7] : memref<144xf32, #tpu.memory_space<smem>>
    %38 = vector.broadcast %37 : f32 to vector<1x64xf32>
    %39 = arith.mulf %38, %8 : vector<1x64xf32>
    %40 = arith.addf %36, %39 : vector<1x64xf32>
    %c8 = arith.constant 8 : index
    %41 = memref.load %arg0[%c8] : memref<144xf32, #tpu.memory_space<smem>>
    %42 = vector.broadcast %41 : f32 to vector<1x64xf32>
    %43 = arith.mulf %42, %11 : vector<1x64xf32>
    %44 = arith.addf %40, %43 : vector<1x64xf32>
    %45 = arith.mulf %22, %44 : vector<1x64xf32>
    %46 = arith.mulf %33, %44 : vector<1x64xf32>
    %c9 = arith.constant 9 : index
    %47 = memref.load %arg0[%c9] : memref<144xf32, #tpu.memory_space<smem>>
    %48 = vector.broadcast %47 : f32 to vector<1x64xf32>
    %49 = arith.mulf %48, %45 : vector<1x64xf32>
    %c10 = arith.constant 10 : index
    %50 = memref.load %arg0[%c10] : memref<144xf32, #tpu.memory_space<smem>>
    %51 = vector.broadcast %50 : f32 to vector<1x64xf32>
    %52 = arith.mulf %51, %46 : vector<1x64xf32>
    %53 = arith.addf %49, %52 : vector<1x64xf32>
    %c11 = arith.constant 11 : index
    %54 = memref.load %arg0[%c11] : memref<144xf32, #tpu.memory_space<smem>>
    %55 = vector.broadcast %54 : f32 to vector<1x64xf32>
    %56 = arith.mulf %55, %44 : vector<1x64xf32>
    %57 = arith.addf %53, %56 : vector<1x64xf32>
    %c21 = arith.constant 21 : index
    %58 = memref.load %arg0[%c21] : memref<144xf32, #tpu.memory_space<smem>>
    %59 = vector.broadcast %58 : f32 to vector<1x64xf32>
    %60 = arith.addf %57, %59 : vector<1x64xf32>
    %c12 = arith.constant 12 : index
    %61 = memref.load %arg0[%c12] : memref<144xf32, #tpu.memory_space<smem>>
    %62 = vector.broadcast %61 : f32 to vector<1x64xf32>
    %63 = arith.mulf %62, %45 : vector<1x64xf32>
    %c13 = arith.constant 13 : index
    %64 = memref.load %arg0[%c13] : memref<144xf32, #tpu.memory_space<smem>>
    %65 = vector.broadcast %64 : f32 to vector<1x64xf32>
    %66 = arith.mulf %65, %46 : vector<1x64xf32>
    %67 = arith.addf %63, %66 : vector<1x64xf32>
    %c14 = arith.constant 14 : index
    %68 = memref.load %arg0[%c14] : memref<144xf32, #tpu.memory_space<smem>>
    %69 = vector.broadcast %68 : f32 to vector<1x64xf32>
    %70 = arith.mulf %69, %44 : vector<1x64xf32>
    %71 = arith.addf %67, %70 : vector<1x64xf32>
    %c22 = arith.constant 22 : index
    %72 = memref.load %arg0[%c22] : memref<144xf32, #tpu.memory_space<smem>>
    %73 = vector.broadcast %72 : f32 to vector<1x64xf32>
    %74 = arith.addf %71, %73 : vector<1x64xf32>
    %c15 = arith.constant 15 : index
    %75 = memref.load %arg0[%c15] : memref<144xf32, #tpu.memory_space<smem>>
    %76 = vector.broadcast %75 : f32 to vector<1x64xf32>
    %77 = arith.mulf %76, %45 : vector<1x64xf32>
    %c16 = arith.constant 16 : index
    %78 = memref.load %arg0[%c16] : memref<144xf32, #tpu.memory_space<smem>>
    %79 = vector.broadcast %78 : f32 to vector<1x64xf32>
    %80 = arith.mulf %79, %46 : vector<1x64xf32>
    %81 = arith.addf %77, %80 : vector<1x64xf32>
    %c17 = arith.constant 17 : index
    %82 = memref.load %arg0[%c17] : memref<144xf32, #tpu.memory_space<smem>>
    %83 = vector.broadcast %82 : f32 to vector<1x64xf32>
    %84 = arith.mulf %83, %44 : vector<1x64xf32>
    %85 = arith.addf %81, %84 : vector<1x64xf32>
    %c23 = arith.constant 23 : index
    %86 = memref.load %arg0[%c23] : memref<144xf32, #tpu.memory_space<smem>>
    %87 = vector.broadcast %86 : f32 to vector<1x64xf32>
    %88 = arith.addf %85, %87 : vector<1x64xf32>
    %c24 = arith.constant 24 : index
    %89 = memref.load %arg0[%c24] : memref<144xf32, #tpu.memory_space<smem>>
    %90 = vector.broadcast %89 : f32 to vector<1x64xf32>
    %91 = arith.mulf %90, %60 : vector<1x64xf32>
    %c25 = arith.constant 25 : index
    %92 = memref.load %arg0[%c25] : memref<144xf32, #tpu.memory_space<smem>>
    %93 = vector.broadcast %92 : f32 to vector<1x64xf32>
    %94 = arith.mulf %93, %74 : vector<1x64xf32>
    %95 = arith.addf %91, %94 : vector<1x64xf32>
    %c26 = arith.constant 26 : index
    %96 = memref.load %arg0[%c26] : memref<144xf32, #tpu.memory_space<smem>>
    %97 = vector.broadcast %96 : f32 to vector<1x64xf32>
    %98 = arith.mulf %97, %88 : vector<1x64xf32>
    %99 = arith.addf %95, %98 : vector<1x64xf32>
    %c33 = arith.constant 33 : index
    %100 = memref.load %arg0[%c33] : memref<144xf32, #tpu.memory_space<smem>>
    %101 = vector.broadcast %100 : f32 to vector<1x64xf32>
    %102 = arith.addf %99, %101 : vector<1x64xf32>
    %c27 = arith.constant 27 : index
    %103 = memref.load %arg0[%c27] : memref<144xf32, #tpu.memory_space<smem>>
    %104 = vector.broadcast %103 : f32 to vector<1x64xf32>
    %105 = arith.mulf %104, %60 : vector<1x64xf32>
    %c28 = arith.constant 28 : index
    %106 = memref.load %arg0[%c28] : memref<144xf32, #tpu.memory_space<smem>>
    %107 = vector.broadcast %106 : f32 to vector<1x64xf32>
    %108 = arith.mulf %107, %74 : vector<1x64xf32>
    %109 = arith.addf %105, %108 : vector<1x64xf32>
    %c29 = arith.constant 29 : index
    %110 = memref.load %arg0[%c29] : memref<144xf32, #tpu.memory_space<smem>>
    %111 = vector.broadcast %110 : f32 to vector<1x64xf32>
    %112 = arith.mulf %111, %88 : vector<1x64xf32>
    %113 = arith.addf %109, %112 : vector<1x64xf32>
    %c34 = arith.constant 34 : index
    %114 = memref.load %arg0[%c34] : memref<144xf32, #tpu.memory_space<smem>>
    %115 = vector.broadcast %114 : f32 to vector<1x64xf32>
    %116 = arith.addf %113, %115 : vector<1x64xf32>
    %c30 = arith.constant 30 : index
    %117 = memref.load %arg0[%c30] : memref<144xf32, #tpu.memory_space<smem>>
    %118 = vector.broadcast %117 : f32 to vector<1x64xf32>
    %119 = arith.mulf %118, %60 : vector<1x64xf32>
    %c31 = arith.constant 31 : index
    %120 = memref.load %arg0[%c31] : memref<144xf32, #tpu.memory_space<smem>>
    %121 = vector.broadcast %120 : f32 to vector<1x64xf32>
    %122 = arith.mulf %121, %74 : vector<1x64xf32>
    %123 = arith.addf %119, %122 : vector<1x64xf32>
    %c32 = arith.constant 32 : index
    %124 = memref.load %arg0[%c32] : memref<144xf32, #tpu.memory_space<smem>>
    %125 = vector.broadcast %124 : f32 to vector<1x64xf32>
    %126 = arith.mulf %125, %88 : vector<1x64xf32>
    %127 = arith.addf %123, %126 : vector<1x64xf32>
    %c35 = arith.constant 35 : index
    %128 = memref.load %arg0[%c35] : memref<144xf32, #tpu.memory_space<smem>>
    %129 = vector.broadcast %128 : f32 to vector<1x64xf32>
    %130 = arith.addf %127, %129 : vector<1x64xf32>
    %cst = arith.constant -8.000000e+00 : f32
    %131 = vector.broadcast %cst : f32 to vector<1x64xf32>
    %132 = arith.subf %102, %131 : vector<1x64xf32>
    %cst_6 = arith.constant 1.000000e+00 : f32
    %133 = vector.broadcast %cst_6 : f32 to vector<1x64xf32>
    %134 = arith.divf %132, %133 : vector<1x64xf32>
    %135 = arith.fptosi %134 : vector<1x64xf32> to vector<1x64xi32>
    %cst_7 = arith.constant -8.000000e+00 : f32
    %136 = vector.broadcast %cst_7 : f32 to vector<1x64xf32>
    %137 = arith.subf %116, %136 : vector<1x64xf32>
    %cst_8 = arith.constant 1.000000e+00 : f32
    %138 = vector.broadcast %cst_8 : f32 to vector<1x64xf32>
    %139 = arith.divf %137, %138 : vector<1x64xf32>
    %140 = arith.fptosi %139 : vector<1x64xf32> to vector<1x64xi32>
    %cst_9 = arith.constant -8.000000e+00 : f32
    %141 = vector.broadcast %cst_9 : f32 to vector<1x64xf32>
    %142 = arith.subf %130, %141 : vector<1x64xf32>
    %cst_10 = arith.constant 1.600000e+01 : f32
    %143 = vector.broadcast %cst_10 : f32 to vector<1x64xf32>
    %144 = arith.divf %142, %143 : vector<1x64xf32>
    %145 = arith.fptosi %144 : vector<1x64xf32> to vector<1x64xi32>
    %c0_i32 = arith.constant 0 : i32
    %146 = vector.broadcast %c0_i32 : i32 to vector<1x64xi32>
    %147 = arith.cmpi sge, %135, %146 : vector<1x64xi32>
    %c16_i32 = arith.constant 16 : i32
    %148 = vector.broadcast %c16_i32 : i32 to vector<1x64xi32>
    %149 = arith.cmpi slt, %135, %148 : vector<1x64xi32>
    %150 = arith.andi %147, %149 : vector<1x64xi1>
    %c0_i32_11 = arith.constant 0 : i32
    %151 = vector.broadcast %c0_i32_11 : i32 to vector<1x64xi32>
    %152 = arith.cmpi sge, %140, %151 : vector<1x64xi32>
    %153 = arith.andi %150, %152 : vector<1x64xi1>
    %c16_i32_12 = arith.constant 16 : i32
    %154 = vector.broadcast %c16_i32_12 : i32 to vector<1x64xi32>
    %155 = arith.cmpi slt, %140, %154 : vector<1x64xi32>
    %156 = arith.andi %153, %155 : vector<1x64xi1>
    %c0_i32_13 = arith.constant 0 : i32
    %157 = vector.broadcast %c0_i32_13 : i32 to vector<1x64xi32>
    %158 = arith.cmpi sge, %145, %157 : vector<1x64xi32>
    %159 = arith.andi %156, %158 : vector<1x64xi1>
    %c1_i32 = arith.constant 1 : i32
    %160 = vector.broadcast %c1_i32 : i32 to vector<1x64xi32>
    %161 = arith.cmpi slt, %145, %160 : vector<1x64xi32>
    %162 = arith.andi %159, %161 : vector<1x64xi1>
    %c0_i32_14 = arith.constant 0 : i32
    %163 = vector.broadcast %c0_i32_14 : i32 to vector<1x64xi32>
    %164 = arith.addi %163, %145 : vector<1x64xi32>
    %c16_i32_15 = arith.constant 16 : i32
    %165 = vector.broadcast %c16_i32_15 : i32 to vector<1x64xi32>
    %166 = arith.muli %164, %165 : vector<1x64xi32>
    %167 = arith.addi %166, %135 : vector<1x64xi32>
    %c16_i32_16 = arith.constant 16 : i32
    %168 = vector.broadcast %c16_i32_16 : i32 to vector<1x64xi32>
    %169 = arith.muli %167, %168 : vector<1x64xi32>
    %170 = arith.addi %169, %140 : vector<1x64xi32>
    %c-1_i32 = arith.constant -1 : i32
    %171 = vector.broadcast %c-1_i32 : i32 to vector<1x64xi32>
    %172 = arith.select %162, %170, %171 : vector<1x64xi1>, vector<1x64xi32>
    %c0_17 = arith.constant 0 : index
    %c0_18 = arith.constant 0 : index
    %173 = vector.load %arg4[%c0_17, %c0_18] : memref<4x64xi32, #tpu.memory_space<vmem>>, vector<1x64xi32>
    tpu.vector_store %arg4[%c0_17, %c0_18], %172 {strides = array<i32>} : memref<4x64xi32, #tpu.memory_space<vmem>>, vector<1x64xi32>,
    %c54 = arith.constant 54 : index
    %174 = memref.load %arg0[%c54] : memref<144xf32, #tpu.memory_space<smem>>
    %175 = vector.broadcast %174 : f32 to vector<1x64xf32>
    %176 = arith.subf %0, %175 : vector<1x64xf32>
    %c55 = arith.constant 55 : index
    %177 = memref.load %arg0[%c55] : memref<144xf32, #tpu.memory_space<smem>>
    %178 = vector.broadcast %177 : f32 to vector<1x64xf32>
    %179 = arith.subf %1, %178 : vector<1x64xf32>
    %c56 = arith.constant 56 : index
    %180 = memref.load %arg0[%c56] : memref<144xf32, #tpu.memory_space<smem>>
    %181 = vector.broadcast %180 : f32 to vector<1x64xf32>
    %182 = arith.subf %2, %181 : vector<1x64xf32>
    %c36 = arith.constant 36 : index
    %183 = memref.load %arg0[%c36] : memref<144xf32, #tpu.memory_space<smem>>
    %184 = vector.broadcast %183 : f32 to vector<1x64xf32>
    %185 = arith.mulf %184, %176 : vector<1x64xf32>
    %c37 = arith.constant 37 : index
    %186 = memref.load %arg0[%c37] : memref<144xf32, #tpu.memory_space<smem>>
    %187 = vector.broadcast %186 : f32 to vector<1x64xf32>
    %188 = arith.mulf %187, %179 : vector<1x64xf32>
    %189 = arith.addf %185, %188 : vector<1x64xf32>
    %c38 = arith.constant 38 : index
    %190 = memref.load %arg0[%c38] : memref<144xf32, #tpu.memory_space<smem>>
    %191 = vector.broadcast %190 : f32 to vector<1x64xf32>
    %192 = arith.mulf %191, %182 : vector<1x64xf32>
    %193 = arith.addf %189, %192 : vector<1x64xf32>
    %c39 = arith.constant 39 : index
    %194 = memref.load %arg0[%c39] : memref<144xf32, #tpu.memory_space<smem>>
    %195 = vector.broadcast %194 : f32 to vector<1x64xf32>
    %196 = arith.mulf %195, %176 : vector<1x64xf32>
    %c40 = arith.constant 40 : index
    %197 = memref.load %arg0[%c40] : memref<144xf32, #tpu.memory_space<smem>>
    %198 = vector.broadcast %197 : f32 to vector<1x64xf32>
    %199 = arith.mulf %198, %179 : vector<1x64xf32>
    %200 = arith.addf %196, %199 : vector<1x64xf32>
    %c41 = arith.constant 41 : index
    %201 = memref.load %arg0[%c41] : memref<144xf32, #tpu.memory_space<smem>>
    %202 = vector.broadcast %201 : f32 to vector<1x64xf32>
    %203 = arith.mulf %202, %182 : vector<1x64xf32>
    %204 = arith.addf %200, %203 : vector<1x64xf32>
    %c42 = arith.constant 42 : index
    %205 = memref.load %arg0[%c42] : memref<144xf32, #tpu.memory_space<smem>>
    %206 = vector.broadcast %205 : f32 to vector<1x64xf32>
    %207 = arith.mulf %206, %176 : vector<1x64xf32>
    %c43 = arith.constant 43 : index
    %208 = memref.load %arg0[%c43] : memref<144xf32, #tpu.memory_space<smem>>
    %209 = vector.broadcast %208 : f32 to vector<1x64xf32>
    %210 = arith.mulf %209, %179 : vector<1x64xf32>
    %211 = arith.addf %207, %210 : vector<1x64xf32>
    %c44 = arith.constant 44 : index
    %212 = memref.load %arg0[%c44] : memref<144xf32, #tpu.memory_space<smem>>
    %213 = vector.broadcast %212 : f32 to vector<1x64xf32>
    %214 = arith.mulf %213, %182 : vector<1x64xf32>
    %215 = arith.addf %211, %214 : vector<1x64xf32>
    %216 = arith.mulf %193, %215 : vector<1x64xf32>
    %217 = arith.mulf %204, %215 : vector<1x64xf32>
    %c45 = arith.constant 45 : index
    %218 = memref.load %arg0[%c45] : memref<144xf32, #tpu.memory_space<smem>>
    %219 = vector.broadcast %218 : f32 to vector<1x64xf32>
    %220 = arith.mulf %219, %216 : vector<1x64xf32>
    %c46 = arith.constant 46 : index
    %221 = memref.load %arg0[%c46] : memref<144xf32, #tpu.memory_space<smem>>
    %222 = vector.broadcast %221 : f32 to vector<1x64xf32>
    %223 = arith.mulf %222, %217 : vector<1x64xf32>
    %224 = arith.addf %220, %223 : vector<1x64xf32>
    %c47 = arith.constant 47 : index
    %225 = memref.load %arg0[%c47] : memref<144xf32, #tpu.memory_space<smem>>
    %226 = vector.broadcast %225 : f32 to vector<1x64xf32>
    %227 = arith.mulf %226, %215 : vector<1x64xf32>
    %228 = arith.addf %224, %227 : vector<1x64xf32>
    %c57 = arith.constant 57 : index
    %229 = memref.load %arg0[%c57] : memref<144xf32, #tpu.memory_space<smem>>
    %230 = vector.broadcast %229 : f32 to vector<1x64xf32>
    %231 = arith.addf %228, %230 : vector<1x64xf32>
    %c48 = arith.constant 48 : index
    %232 = memref.load %arg0[%c48] : memref<144xf32, #tpu.memory_space<smem>>
    %233 = vector.broadcast %232 : f32 to vector<1x64xf32>
    %234 = arith.mulf %233, %216 : vector<1x64xf32>
    %c49 = arith.constant 49 : index
    %235 = memref.load %arg0[%c49] : memref<144xf32, #tpu.memory_space<smem>>
    %236 = vector.broadcast %235 : f32 to vector<1x64xf32>
    %237 = arith.mulf %236, %217 : vector<1x64xf32>
    %238 = arith.addf %234, %237 : vector<1x64xf32>
    %c50 = arith.constant 50 : index
    %239 = memref.load %arg0[%c50] : memref<144xf32, #tpu.memory_space<smem>>
    %240 = vector.broadcast %239 : f32 to vector<1x64xf32>
    %241 = arith.mulf %240, %215 : vector<1x64xf32>
    %242 = arith.addf %238, %241 : vector<1x64xf32>
    %c58 = arith.constant 58 : index
    %243 = memref.load %arg0[%c58] : memref<144xf32, #tpu.memory_space<smem>>
    %244 = vector.broadcast %243 : f32 to vector<1x64xf32>
    %245 = arith.addf %242, %244 : vector<1x64xf32>
    %c51 = arith.constant 51 : index
    %246 = memref.load %arg0[%c51] : memref<144xf32, #tpu.memory_space<smem>>
    %247 = vector.broadcast %246 : f32 to vector<1x64xf32>
    %248 = arith.mulf %247, %216 : vector<1x64xf32>
    %c52 = arith.constant 52 : index
    %249 = memref.load %arg0[%c52] : memref<144xf32, #tpu.memory_space<smem>>
    %250 = vector.broadcast %249 : f32 to vector<1x64xf32>
    %251 = arith.mulf %250, %217 : vector<1x64xf32>
    %252 = arith.addf %248, %251 : vector<1x64xf32>
    %c53 = arith.constant 53 : index
    %253 = memref.load %arg0[%c53] : memref<144xf32, #tpu.memory_space<smem>>
    %254 = vector.broadcast %253 : f32 to vector<1x64xf32>
    %255 = arith.mulf %254, %215 : vector<1x64xf32>
    %256 = arith.addf %252, %255 : vector<1x64xf32>
    %c59 = arith.constant 59 : index
    %257 = memref.load %arg0[%c59] : memref<144xf32, #tpu.memory_space<smem>>
    %258 = vector.broadcast %257 : f32 to vector<1x64xf32>
    %259 = arith.addf %256, %258 : vector<1x64xf32>
    %c60 = arith.constant 60 : index
    %260 = memref.load %arg0[%c60] : memref<144xf32, #tpu.memory_space<smem>>
    %261 = vector.broadcast %260 : f32 to vector<1x64xf32>
    %262 = arith.mulf %261, %231 : vector<1x64xf32>
    %c61 = arith.constant 61 : index
    %263 = memref.load %arg0[%c61] : memref<144xf32, #tpu.memory_space<smem>>
    %264 = vector.broadcast %263 : f32 to vector<1x64xf32>
    %265 = arith.mulf %264, %245 : vector<1x64xf32>
    %266 = arith.addf %262, %265 : vector<1x64xf32>
    %c62 = arith.constant 62 : index
    %267 = memref.load %arg0[%c62] : memref<144xf32, #tpu.memory_space<smem>>
    %268 = vector.broadcast %267 : f32 to vector<1x64xf32>
    %269 = arith.mulf %268, %259 : vector<1x64xf32>
    %270 = arith.addf %266, %269 : vector<1x64xf32>
    %c69 = arith.constant 69 : index
    %271 = memref.load %arg0[%c69] : memref<144xf32, #tpu.memory_space<smem>>
    %272 = vector.broadcast %271 : f32 to vector<1x64xf32>
    %273 = arith.addf %270, %272 : vector<1x64xf32>
    %c63 = arith.constant 63 : index
    %274 = memref.load %arg0[%c63] : memref<144xf32, #tpu.memory_space<smem>>
    %275 = vector.broadcast %274 : f32 to vector<1x64xf32>
    %276 = arith.mulf %275, %231 : vector<1x64xf32>
    %c64 = arith.constant 64 : index
    %277 = memref.load %arg0[%c64] : memref<144xf32, #tpu.memory_space<smem>>
    %278 = vector.broadcast %277 : f32 to vector<1x64xf32>
    %279 = arith.mulf %278, %245 : vector<1x64xf32>
    %280 = arith.addf %276, %279 : vector<1x64xf32>
    %c65 = arith.constant 65 : index
    %281 = memref.load %arg0[%c65] : memref<144xf32, #tpu.memory_space<smem>>
    %282 = vector.broadcast %281 : f32 to vector<1x64xf32>
    %283 = arith.mulf %282, %259 : vector<1x64xf32>
    %284 = arith.addf %280, %283 : vector<1x64xf32>
    %c70 = arith.constant 70 : index
    %285 = memref.load %arg0[%c70] : memref<144xf32, #tpu.memory_space<smem>>
    %286 = vector.broadcast %285 : f32 to vector<1x64xf32>
    %287 = arith.addf %284, %286 : vector<1x64xf32>
    %c66 = arith.constant 66 : index
    %288 = memref.load %arg0[%c66] : memref<144xf32, #tpu.memory_space<smem>>
    %289 = vector.broadcast %288 : f32 to vector<1x64xf32>
    %290 = arith.mulf %289, %231 : vector<1x64xf32>
    %c67 = arith.constant 67 : index
    %291 = memref.load %arg0[%c67] : memref<144xf32, #tpu.memory_space<smem>>
    %292 = vector.broadcast %291 : f32 to vector<1x64xf32>
    %293 = arith.mulf %292, %245 : vector<1x64xf32>
    %294 = arith.addf %290, %293 : vector<1x64xf32>
    %c68 = arith.constant 68 : index
    %295 = memref.load %arg0[%c68] : memref<144xf32, #tpu.memory_space<smem>>
    %296 = vector.broadcast %295 : f32 to vector<1x64xf32>
    %297 = arith.mulf %296, %259 : vector<1x64xf32>
    %298 = arith.addf %294, %297 : vector<1x64xf32>
    %c71 = arith.constant 71 : index
    %299 = memref.load %arg0[%c71] : memref<144xf32, #tpu.memory_space<smem>>
    %300 = vector.broadcast %299 : f32 to vector<1x64xf32>
    %301 = arith.addf %298, %300 : vector<1x64xf32>
    %cst_19 = arith.constant -8.000000e+00 : f32
    %302 = vector.broadcast %cst_19 : f32 to vector<1x64xf32>
    %303 = arith.subf %273, %302 : vector<1x64xf32>
    %cst_20 = arith.constant 1.000000e+00 : f32
    %304 = vector.broadcast %cst_20 : f32 to vector<1x64xf32>
    %305 = arith.divf %303, %304 : vector<1x64xf32>
    %306 = arith.fptosi %305 : vector<1x64xf32> to vector<1x64xi32>
    %cst_21 = arith.constant -8.000000e+00 : f32
    %307 = vector.broadcast %cst_21 : f32 to vector<1x64xf32>
    %308 = arith.subf %287, %307 : vector<1x64xf32>
    %cst_22 = arith.constant 1.000000e+00 : f32
    %309 = vector.broadcast %cst_22 : f32 to vector<1x64xf32>
    %310 = arith.divf %308, %309 : vector<1x64xf32>
    %311 = arith.fptosi %310 : vector<1x64xf32> to vector<1x64xi32>
    %cst_23 = arith.constant -8.000000e+00 : f32
    %312 = vector.broadcast %cst_23 : f32 to vector<1x64xf32>
    %313 = arith.subf %301, %312 : vector<1x64xf32>
    %cst_24 = arith.constant 1.600000e+01 : f32
    %314 = vector.broadcast %cst_24 : f32 to vector<1x64xf32>
    %315 = arith.divf %313, %314 : vector<1x64xf32>
    %316 = arith.fptosi %315 : vector<1x64xf32> to vector<1x64xi32>
    %c0_i32_25 = arith.constant 0 : i32
    %317 = vector.broadcast %c0_i32_25 : i32 to vector<1x64xi32>
    %318 = arith.cmpi sge, %306, %317 : vector<1x64xi32>
    %c16_i32_26 = arith.constant 16 : i32
    %319 = vector.broadcast %c16_i32_26 : i32 to vector<1x64xi32>
    %320 = arith.cmpi slt, %306, %319 : vector<1x64xi32>
    %321 = arith.andi %318, %320 : vector<1x64xi1>
    %c0_i32_27 = arith.constant 0 : i32
    %322 = vector.broadcast %c0_i32_27 : i32 to vector<1x64xi32>
    %323 = arith.cmpi sge, %311, %322 : vector<1x64xi32>
    %324 = arith.andi %321, %323 : vector<1x64xi1>
    %c16_i32_28 = arith.constant 16 : i32
    %325 = vector.broadcast %c16_i32_28 : i32 to vector<1x64xi32>
    %326 = arith.cmpi slt, %311, %325 : vector<1x64xi32>
    %327 = arith.andi %324, %326 : vector<1x64xi1>
    %c0_i32_29 = arith.constant 0 : i32
    %328 = vector.broadcast %c0_i32_29 : i32 to vector<1x64xi32>
    %329 = arith.cmpi sge, %316, %328 : vector<1x64xi32>
    %330 = arith.andi %327, %329 : vector<1x64xi1>
    %c1_i32_30 = arith.constant 1 : i32
    %331 = vector.broadcast %c1_i32_30 : i32 to vector<1x64xi32>
    %332 = arith.cmpi slt, %316, %331 : vector<1x64xi32>
    %333 = arith.andi %330, %332 : vector<1x64xi1>
    %c0_i32_31 = arith.constant 0 : i32
    %334 = vector.broadcast %c0_i32_31 : i32 to vector<1x64xi32>
    %335 = arith.addi %334, %316 : vector<1x64xi32>
    %c16_i32_32 = arith.constant 16 : i32
    %336 = vector.broadcast %c16_i32_32 : i32 to vector<1x64xi32>
    %337 = arith.muli %335, %336 : vector<1x64xi32>
    %338 = arith.addi %337, %306 : vector<1x64xi32>
    %c16_i32_33 = arith.constant 16 : i32
    %339 = vector.broadcast %c16_i32_33 : i32 to vector<1x64xi32>
    %340 = arith.muli %338, %339 : vector<1x64xi32>
    %341 = arith.addi %340, %311 : vector<1x64xi32>
    %c-1_i32_34 = arith.constant -1 : i32
    %342 = vector.broadcast %c-1_i32_34 : i32 to vector<1x64xi32>
    %343 = arith.select %333, %341, %342 : vector<1x64xi1>, vector<1x64xi32>
    %c1_35 = arith.constant 1 : index
    %c0_36 = arith.constant 0 : index
    %344 = vector.load %arg4[%c1_35, %c0_36] : memref<4x64xi32, #tpu.memory_space<vmem>>, vector<1x64xi32>
    tpu.vector_store %arg4[%c1_35, %c0_36], %343 {strides = array<i32>} : memref<4x64xi32, #tpu.memory_space<vmem>>, vector<1x64xi32>,
    %c90 = arith.constant 90 : index
    %345 = memref.load %arg0[%c90] : memref<144xf32, #tpu.memory_space<smem>>
    %346 = vector.broadcast %345 : f32 to vector<1x64xf32>
    %347 = arith.subf %0, %346 : vector<1x64xf32>
    %c91 = arith.constant 91 : index
    %348 = memref.load %arg0[%c91] : memref<144xf32, #tpu.memory_space<smem>>
    %349 = vector.broadcast %348 : f32 to vector<1x64xf32>
    %350 = arith.subf %1, %349 : vector<1x64xf32>
    %c92 = arith.constant 92 : index
    %351 = memref.load %arg0[%c92] : memref<144xf32, #tpu.memory_space<smem>>
    %352 = vector.broadcast %351 : f32 to vector<1x64xf32>
    %353 = arith.subf %2, %352 : vector<1x64xf32>
    %c72 = arith.constant 72 : index
    %354 = memref.load %arg0[%c72] : memref<144xf32, #tpu.memory_space<smem>>
    %355 = vector.broadcast %354 : f32 to vector<1x64xf32>
    %356 = arith.mulf %355, %347 : vector<1x64xf32>
    %c73 = arith.constant 73 : index
    %357 = memref.load %arg0[%c73] : memref<144xf32, #tpu.memory_space<smem>>
    %358 = vector.broadcast %357 : f32 to vector<1x64xf32>
    %359 = arith.mulf %358, %350 : vector<1x64xf32>
    %360 = arith.addf %356, %359 : vector<1x64xf32>
    %c74 = arith.constant 74 : index
    %361 = memref.load %arg0[%c74] : memref<144xf32, #tpu.memory_space<smem>>
    %362 = vector.broadcast %361 : f32 to vector<1x64xf32>
    %363 = arith.mulf %362, %353 : vector<1x64xf32>
    %364 = arith.addf %360, %363 : vector<1x64xf32>
    %c75 = arith.constant 75 : index
    %365 = memref.load %arg0[%c75] : memref<144xf32, #tpu.memory_space<smem>>
    %366 = vector.broadcast %365 : f32 to vector<1x64xf32>
    %367 = arith.mulf %366, %347 : vector<1x64xf32>
    %c76 = arith.constant 76 : index
    %368 = memref.load %arg0[%c76] : memref<144xf32, #tpu.memory_space<smem>>
    %369 = vector.broadcast %368 : f32 to vector<1x64xf32>
    %370 = arith.mulf %369, %350 : vector<1x64xf32>
    %371 = arith.addf %367, %370 : vector<1x64xf32>
    %c77 = arith.constant 77 : index
    %372 = memref.load %arg0[%c77] : memref<144xf32, #tpu.memory_space<smem>>
    %373 = vector.broadcast %372 : f32 to vector<1x64xf32>
    %374 = arith.mulf %373, %353 : vector<1x64xf32>
    %375 = arith.addf %371, %374 : vector<1x64xf32>
    %c78 = arith.constant 78 : index
    %376 = memref.load %arg0[%c78] : memref<144xf32, #tpu.memory_space<smem>>
    %377 = vector.broadcast %376 : f32 to vector<1x64xf32>
    %378 = arith.mulf %377, %347 : vector<1x64xf32>
    %c79 = arith.constant 79 : index
    %379 = memref.load %arg0[%c79] : memref<144xf32, #tpu.memory_space<smem>>
    %380 = vector.broadcast %379 : f32 to vector<1x64xf32>
    %381 = arith.mulf %380, %350 : vector<1x64xf32>
    %382 = arith.addf %378, %381 : vector<1x64xf32>
    %c80 = arith.constant 80 : index
    %383 = memref.load %arg0[%c80] : memref<144xf32, #tpu.memory_space<smem>>
    %384 = vector.broadcast %383 : f32 to vector<1x64xf32>
    %385 = arith.mulf %384, %353 : vector<1x64xf32>
    %386 = arith.addf %382, %385 : vector<1x64xf32>
    %387 = arith.mulf %364, %386 : vector<1x64xf32>
    %388 = arith.mulf %375, %386 : vector<1x64xf32>
    %c81 = arith.constant 81 : index
    %389 = memref.load %arg0[%c81] : memref<144xf32, #tpu.memory_space<smem>>
    %390 = vector.broadcast %389 : f32 to vector<1x64xf32>
    %391 = arith.mulf %390, %387 : vector<1x64xf32>
    %c82 = arith.constant 82 : index
    %392 = memref.load %arg0[%c82] : memref<144xf32, #tpu.memory_space<smem>>
    %393 = vector.broadcast %392 : f32 to vector<1x64xf32>
    %394 = arith.mulf %393, %388 : vector<1x64xf32>
    %395 = arith.addf %391, %394 : vector<1x64xf32>
    %c83 = arith.constant 83 : index
    %396 = memref.load %arg0[%c83] : memref<144xf32, #tpu.memory_space<smem>>
    %397 = vector.broadcast %396 : f32 to vector<1x64xf32>
    %398 = arith.mulf %397, %386 : vector<1x64xf32>
    %399 = arith.addf %395, %398 : vector<1x64xf32>
    %c93 = arith.constant 93 : index
    %400 = memref.load %arg0[%c93] : memref<144xf32, #tpu.memory_space<smem>>
    %401 = vector.broadcast %400 : f32 to vector<1x64xf32>
    %402 = arith.addf %399, %401 : vector<1x64xf32>
    %c84 = arith.constant 84 : index
    %403 = memref.load %arg0[%c84] : memref<144xf32, #tpu.memory_space<smem>>
    %404 = vector.broadcast %403 : f32 to vector<1x64xf32>
    %405 = arith.mulf %404, %387 : vector<1x64xf32>
    %c85 = arith.constant 85 : index
    %406 = memref.load %arg0[%c85] : memref<144xf32, #tpu.memory_space<smem>>
    %407 = vector.broadcast %406 : f32 to vector<1x64xf32>
    %408 = arith.mulf %407, %388 : vector<1x64xf32>
    %409 = arith.addf %405, %408 : vector<1x64xf32>
    %c86 = arith.constant 86 : index
    %410 = memref.load %arg0[%c86] : memref<144xf32, #tpu.memory_space<smem>>
    %411 = vector.broadcast %410 : f32 to vector<1x64xf32>
    %412 = arith.mulf %411, %386 : vector<1x64xf32>
    %413 = arith.addf %409, %412 : vector<1x64xf32>
    %c94 = arith.constant 94 : index
    %414 = memref.load %arg0[%c94] : memref<144xf32, #tpu.memory_space<smem>>
    %415 = vector.broadcast %414 : f32 to vector<1x64xf32>
    %416 = arith.addf %413, %415 : vector<1x64xf32>
    %c87 = arith.constant 87 : index
    %417 = memref.load %arg0[%c87] : memref<144xf32, #tpu.memory_space<smem>>
    %418 = vector.broadcast %417 : f32 to vector<1x64xf32>
    %419 = arith.mulf %418, %387 : vector<1x64xf32>
    %c88 = arith.constant 88 : index
    %420 = memref.load %arg0[%c88] : memref<144xf32, #tpu.memory_space<smem>>
    %421 = vector.broadcast %420 : f32 to vector<1x64xf32>
    %422 = arith.mulf %421, %388 : vector<1x64xf32>
    %423 = arith.addf %419, %422 : vector<1x64xf32>
    %c89 = arith.constant 89 : index
    %424 = memref.load %arg0[%c89] : memref<144xf32, #tpu.memory_space<smem>>
    %425 = vector.broadcast %424 : f32 to vector<1x64xf32>
    %426 = arith.mulf %425, %386 : vector<1x64xf32>
    %427 = arith.addf %423, %426 : vector<1x64xf32>
    %c95 = arith.constant 95 : index
    %428 = memref.load %arg0[%c95] : memref<144xf32, #tpu.memory_space<smem>>
    %429 = vector.broadcast %428 : f32 to vector<1x64xf32>
    %430 = arith.addf %427, %429 : vector<1x64xf32>
    %c96 = arith.constant 96 : index
    %431 = memref.load %arg0[%c96] : memref<144xf32, #tpu.memory_space<smem>>
    %432 = vector.broadcast %431 : f32 to vector<1x64xf32>
    %433 = arith.mulf %432, %402 : vector<1x64xf32>
    %c97 = arith.constant 97 : index
    %434 = memref.load %arg0[%c97] : memref<144xf32, #tpu.memory_space<smem>>
    %435 = vector.broadcast %434 : f32 to vector<1x64xf32>
    %436 = arith.mulf %435, %416 : vector<1x64xf32>
    %437 = arith.addf %433, %436 : vector<1x64xf32>
    %c98 = arith.constant 98 : index
    %438 = memref.load %arg0[%c98] : memref<144xf32, #tpu.memory_space<smem>>
    %439 = vector.broadcast %438 : f32 to vector<1x64xf32>
    %440 = arith.mulf %439, %430 : vector<1x64xf32>
    %441 = arith.addf %437, %440 : vector<1x64xf32>
    %c105 = arith.constant 105 : index
    %442 = memref.load %arg0[%c105] : memref<144xf32, #tpu.memory_space<smem>>
    %443 = vector.broadcast %442 : f32 to vector<1x64xf32>
    %444 = arith.addf %441, %443 : vector<1x64xf32>
    %c99 = arith.constant 99 : index
    %445 = memref.load %arg0[%c99] : memref<144xf32, #tpu.memory_space<smem>>
    %446 = vector.broadcast %445 : f32 to vector<1x64xf32>
    %447 = arith.mulf %446, %402 : vector<1x64xf32>
    %c100 = arith.constant 100 : index
    %448 = memref.load %arg0[%c100] : memref<144xf32, #tpu.memory_space<smem>>
    %449 = vector.broadcast %448 : f32 to vector<1x64xf32>
    %450 = arith.mulf %449, %416 : vector<1x64xf32>
    %451 = arith.addf %447, %450 : vector<1x64xf32>
    %c101 = arith.constant 101 : index
    %452 = memref.load %arg0[%c101] : memref<144xf32, #tpu.memory_space<smem>>
    %453 = vector.broadcast %452 : f32 to vector<1x64xf32>
    %454 = arith.mulf %453, %430 : vector<1x64xf32>
    %455 = arith.addf %451, %454 : vector<1x64xf32>
    %c106 = arith.constant 106 : index
    %456 = memref.load %arg0[%c106] : memref<144xf32, #tpu.memory_space<smem>>
    %457 = vector.broadcast %456 : f32 to vector<1x64xf32>
    %458 = arith.addf %455, %457 : vector<1x64xf32>
    %c102 = arith.constant 102 : index
    %459 = memref.load %arg0[%c102] : memref<144xf32, #tpu.memory_space<smem>>
    %460 = vector.broadcast %459 : f32 to vector<1x64xf32>
    %461 = arith.mulf %460, %402 : vector<1x64xf32>
    %c103 = arith.constant 103 : index
    %462 = memref.load %arg0[%c103] : memref<144xf32, #tpu.memory_space<smem>>
    %463 = vector.broadcast %462 : f32 to vector<1x64xf32>
    %464 = arith.mulf %463, %416 : vector<1x64xf32>
    %465 = arith.addf %461, %464 : vector<1x64xf32>
    %c104 = arith.constant 104 : index
    %466 = memref.load %arg0[%c104] : memref<144xf32, #tpu.memory_space<smem>>
    %467 = vector.broadcast %466 : f32 to vector<1x64xf32>
    %468 = arith.mulf %467, %430 : vector<1x64xf32>
    %469 = arith.addf %465, %468 : vector<1x64xf32>
    %c107 = arith.constant 107 : index
    %470 = memref.load %arg0[%c107] : memref<144xf32, #tpu.memory_space<smem>>
    %471 = vector.broadcast %470 : f32 to vector<1x64xf32>
    %472 = arith.addf %469, %471 : vector<1x64xf32>
    %cst_37 = arith.constant -8.000000e+00 : f32
    %473 = vector.broadcast %cst_37 : f32 to vector<1x64xf32>
    %474 = arith.subf %444, %473 : vector<1x64xf32>
    %cst_38 = arith.constant 1.000000e+00 : f32
    %475 = vector.broadcast %cst_38 : f32 to vector<1x64xf32>
    %476 = arith.divf %474, %475 : vector<1x64xf32>
    %477 = arith.fptosi %476 : vector<1x64xf32> to vector<1x64xi32>
    %cst_39 = arith.constant -8.000000e+00 : f32
    %478 = vector.broadcast %cst_39 : f32 to vector<1x64xf32>
    %479 = arith.subf %458, %478 : vector<1x64xf32>
    %cst_40 = arith.constant 1.000000e+00 : f32
    %480 = vector.broadcast %cst_40 : f32 to vector<1x64xf32>
    %481 = arith.divf %479, %480 : vector<1x64xf32>
    %482 = arith.fptosi %481 : vector<1x64xf32> to vector<1x64xi32>
    %cst_41 = arith.constant -8.000000e+00 : f32
    %483 = vector.broadcast %cst_41 : f32 to vector<1x64xf32>
    %484 = arith.subf %472, %483 : vector<1x64xf32>
    %cst_42 = arith.constant 1.600000e+01 : f32
    %485 = vector.broadcast %cst_42 : f32 to vector<1x64xf32>
    %486 = arith.divf %484, %485 : vector<1x64xf32>
    %487 = arith.fptosi %486 : vector<1x64xf32> to vector<1x64xi32>
    %c0_i32_43 = arith.constant 0 : i32
    %488 = vector.broadcast %c0_i32_43 : i32 to vector<1x64xi32>
    %489 = arith.cmpi sge, %477, %488 : vector<1x64xi32>
    %c16_i32_44 = arith.constant 16 : i32
    %490 = vector.broadcast %c16_i32_44 : i32 to vector<1x64xi32>
    %491 = arith.cmpi slt, %477, %490 : vector<1x64xi32>
    %492 = arith.andi %489, %491 : vector<1x64xi1>
    %c0_i32_45 = arith.constant 0 : i32
    %493 = vector.broadcast %c0_i32_45 : i32 to vector<1x64xi32>
    %494 = arith.cmpi sge, %482, %493 : vector<1x64xi32>
    %495 = arith.andi %492, %494 : vector<1x64xi1>
    %c16_i32_46 = arith.constant 16 : i32
    %496 = vector.broadcast %c16_i32_46 : i32 to vector<1x64xi32>
    %497 = arith.cmpi slt, %482, %496 : vector<1x64xi32>
    %498 = arith.andi %495, %497 : vector<1x64xi1>
    %c0_i32_47 = arith.constant 0 : i32
    %499 = vector.broadcast %c0_i32_47 : i32 to vector<1x64xi32>
    %500 = arith.cmpi sge, %487, %499 : vector<1x64xi32>
    %501 = arith.andi %498, %500 : vector<1x64xi1>
    %c1_i32_48 = arith.constant 1 : i32
    %502 = vector.broadcast %c1_i32_48 : i32 to vector<1x64xi32>
    %503 = arith.cmpi slt, %487, %502 : vector<1x64xi32>
    %504 = arith.andi %501, %503 : vector<1x64xi1>
    %c1_i32_49 = arith.constant 1 : i32
    %505 = vector.broadcast %c1_i32_49 : i32 to vector<1x64xi32>
    %506 = arith.addi %505, %487 : vector<1x64xi32>
    %c16_i32_50 = arith.constant 16 : i32
    %507 = vector.broadcast %c16_i32_50 : i32 to vector<1x64xi32>
    %508 = arith.muli %506, %507 : vector<1x64xi32>
    %509 = arith.addi %508, %477 : vector<1x64xi32>
    %c16_i32_51 = arith.constant 16 : i32
    %510 = vector.broadcast %c16_i32_51 : i32 to vector<1x64xi32>
    %511 = arith.muli %509, %510 : vector<1x64xi32>
    %512 = arith.addi %511, %482 : vector<1x64xi32>
    %c-1_i32_52 = arith.constant -1 : i32
    %513 = vector.broadcast %c-1_i32_52 : i32 to vector<1x64xi32>
    %514 = arith.select %504, %512, %513 : vector<1x64xi1>, vector<1x64xi32>
    %c2_53 = arith.constant 2 : index
    %c0_54 = arith.constant 0 : index
    %515 = vector.load %arg4[%c2_53, %c0_54] : memref<4x64xi32, #tpu.memory_space<vmem>>, vector<1x64xi32>
    tpu.vector_store %arg4[%c2_53, %c0_54], %514 {strides = array<i32>} : memref<4x64xi32, #tpu.memory_space<vmem>>, vector<1x64xi32>,
    %c126 = arith.constant 126 : index
    %516 = memref.load %arg0[%c126] : memref<144xf32, #tpu.memory_space<smem>>
    %517 = vector.broadcast %516 : f32 to vector<1x64xf32>
    %518 = arith.subf %0, %517 : vector<1x64xf32>
    %c127 = arith.constant 127 : index
    %519 = memref.load %arg0[%c127] : memref<144xf32, #tpu.memory_space<smem>>
    %520 = vector.broadcast %519 : f32 to vector<1x64xf32>
    %521 = arith.subf %1, %520 : vector<1x64xf32>
    %c128 = arith.constant 128 : index
    %522 = memref.load %arg0[%c128] : memref<144xf32, #tpu.memory_space<smem>>
    %523 = vector.broadcast %522 : f32 to vector<1x64xf32>
    %524 = arith.subf %2, %523 : vector<1x64xf32>
    %c108 = arith.constant 108 : index
    %525 = memref.load %arg0[%c108] : memref<144xf32, #tpu.memory_space<smem>>
    %526 = vector.broadcast %525 : f32 to vector<1x64xf32>
    %527 = arith.mulf %526, %518 : vector<1x64xf32>
    %c109 = arith.constant 109 : index
    %528 = memref.load %arg0[%c109] : memref<144xf32, #tpu.memory_space<smem>>
    %529 = vector.broadcast %528 : f32 to vector<1x64xf32>
    %530 = arith.mulf %529, %521 : vector<1x64xf32>
    %531 = arith.addf %527, %530 : vector<1x64xf32>
    %c110 = arith.constant 110 : index
    %532 = memref.load %arg0[%c110] : memref<144xf32, #tpu.memory_space<smem>>
    %533 = vector.broadcast %532 : f32 to vector<1x64xf32>
    %534 = arith.mulf %533, %524 : vector<1x64xf32>
    %535 = arith.addf %531, %534 : vector<1x64xf32>
    %c111 = arith.constant 111 : index
    %536 = memref.load %arg0[%c111] : memref<144xf32, #tpu.memory_space<smem>>
    %537 = vector.broadcast %536 : f32 to vector<1x64xf32>
    %538 = arith.mulf %537, %518 : vector<1x64xf32>
    %c112 = arith.constant 112 : index
    %539 = memref.load %arg0[%c112] : memref<144xf32, #tpu.memory_space<smem>>
    %540 = vector.broadcast %539 : f32 to vector<1x64xf32>
    %541 = arith.mulf %540, %521 : vector<1x64xf32>
    %542 = arith.addf %538, %541 : vector<1x64xf32>
    %c113 = arith.constant 113 : index
    %543 = memref.load %arg0[%c113] : memref<144xf32, #tpu.memory_space<smem>>
    %544 = vector.broadcast %543 : f32 to vector<1x64xf32>
    %545 = arith.mulf %544, %524 : vector<1x64xf32>
    %546 = arith.addf %542, %545 : vector<1x64xf32>
    %c114 = arith.constant 114 : index
    %547 = memref.load %arg0[%c114] : memref<144xf32, #tpu.memory_space<smem>>
    %548 = vector.broadcast %547 : f32 to vector<1x64xf32>
    %549 = arith.mulf %548, %518 : vector<1x64xf32>
    %c115 = arith.constant 115 : index
    %550 = memref.load %arg0[%c115] : memref<144xf32, #tpu.memory_space<smem>>
    %551 = vector.broadcast %550 : f32 to vector<1x64xf32>
    %552 = arith.mulf %551, %521 : vector<1x64xf32>
    %553 = arith.addf %549, %552 : vector<1x64xf32>
    %c116 = arith.constant 116 : index
    %554 = memref.load %arg0[%c116] : memref<144xf32, #tpu.memory_space<smem>>
    %555 = vector.broadcast %554 : f32 to vector<1x64xf32>
    %556 = arith.mulf %555, %524 : vector<1x64xf32>
    %557 = arith.addf %553, %556 : vector<1x64xf32>
    %558 = arith.mulf %535, %557 : vector<1x64xf32>
    %559 = arith.mulf %546, %557 : vector<1x64xf32>
    %c117 = arith.constant 117 : index
    %560 = memref.load %arg0[%c117] : memref<144xf32, #tpu.memory_space<smem>>
    %561 = vector.broadcast %560 : f32 to vector<1x64xf32>
    %562 = arith.mulf %561, %558 : vector<1x64xf32>
    %c118 = arith.constant 118 : index
    %563 = memref.load %arg0[%c118] : memref<144xf32, #tpu.memory_space<smem>>
    %564 = vector.broadcast %563 : f32 to vector<1x64xf32>
    %565 = arith.mulf %564, %559 : vector<1x64xf32>
    %566 = arith.addf %562, %565 : vector<1x64xf32>
    %c119 = arith.constant 119 : index
    %567 = memref.load %arg0[%c119] : memref<144xf32, #tpu.memory_space<smem>>
    %568 = vector.broadcast %567 : f32 to vector<1x64xf32>
    %569 = arith.mulf %568, %557 : vector<1x64xf32>
    %570 = arith.addf %566, %569 : vector<1x64xf32>
    %c129 = arith.constant 129 : index
    %571 = memref.load %arg0[%c129] : memref<144xf32, #tpu.memory_space<smem>>
    %572 = vector.broadcast %571 : f32 to vector<1x64xf32>
    %573 = arith.addf %570, %572 : vector<1x64xf32>
    %c120 = arith.constant 120 : index
    %574 = memref.load %arg0[%c120] : memref<144xf32, #tpu.memory_space<smem>>
    %575 = vector.broadcast %574 : f32 to vector<1x64xf32>
    %576 = arith.mulf %575, %558 : vector<1x64xf32>
    %c121 = arith.constant 121 : index
    %577 = memref.load %arg0[%c121] : memref<144xf32, #tpu.memory_space<smem>>
    %578 = vector.broadcast %577 : f32 to vector<1x64xf32>
    %579 = arith.mulf %578, %559 : vector<1x64xf32>
    %580 = arith.addf %576, %579 : vector<1x64xf32>
    %c122 = arith.constant 122 : index
    %581 = memref.load %arg0[%c122] : memref<144xf32, #tpu.memory_space<smem>>
    %582 = vector.broadcast %581 : f32 to vector<1x64xf32>
    %583 = arith.mulf %582, %557 : vector<1x64xf32>
    %584 = arith.addf %580, %583 : vector<1x64xf32>
    %c130 = arith.constant 130 : index
    %585 = memref.load %arg0[%c130] : memref<144xf32, #tpu.memory_space<smem>>
    %586 = vector.broadcast %585 : f32 to vector<1x64xf32>
    %587 = arith.addf %584, %586 : vector<1x64xf32>
    %c123 = arith.constant 123 : index
    %588 = memref.load %arg0[%c123] : memref<144xf32, #tpu.memory_space<smem>>
    %589 = vector.broadcast %588 : f32 to vector<1x64xf32>
    %590 = arith.mulf %589, %558 : vector<1x64xf32>
    %c124 = arith.constant 124 : index
    %591 = memref.load %arg0[%c124] : memref<144xf32, #tpu.memory_space<smem>>
    %592 = vector.broadcast %591 : f32 to vector<1x64xf32>
    %593 = arith.mulf %592, %559 : vector<1x64xf32>
    %594 = arith.addf %590, %593 : vector<1x64xf32>
    %c125 = arith.constant 125 : index
    %595 = memref.load %arg0[%c125] : memref<144xf32, #tpu.memory_space<smem>>
    %596 = vector.broadcast %595 : f32 to vector<1x64xf32>
    %597 = arith.mulf %596, %557 : vector<1x64xf32>
    %598 = arith.addf %594, %597 : vector<1x64xf32>
    %c131 = arith.constant 131 : index
    %599 = memref.load %arg0[%c131] : memref<144xf32, #tpu.memory_space<smem>>
    %600 = vector.broadcast %599 : f32 to vector<1x64xf32>
    %601 = arith.addf %598, %600 : vector<1x64xf32>
    %c132 = arith.constant 132 : index
    %602 = memref.load %arg0[%c132] : memref<144xf32, #tpu.memory_space<smem>>
    %603 = vector.broadcast %602 : f32 to vector<1x64xf32>
    %604 = arith.mulf %603, %573 : vector<1x64xf32>
    %c133 = arith.constant 133 : index
    %605 = memref.load %arg0[%c133] : memref<144xf32, #tpu.memory_space<smem>>
    %606 = vector.broadcast %605 : f32 to vector<1x64xf32>
    %607 = arith.mulf %606, %587 : vector<1x64xf32>
    %608 = arith.addf %604, %607 : vector<1x64xf32>
    %c134 = arith.constant 134 : index
    %609 = memref.load %arg0[%c134] : memref<144xf32, #tpu.memory_space<smem>>
    %610 = vector.broadcast %609 : f32 to vector<1x64xf32>
    %611 = arith.mulf %610, %601 : vector<1x64xf32>
    %612 = arith.addf %608, %611 : vector<1x64xf32>
    %c141 = arith.constant 141 : index
    %613 = memref.load %arg0[%c141] : memref<144xf32, #tpu.memory_space<smem>>
    %614 = vector.broadcast %613 : f32 to vector<1x64xf32>
    %615 = arith.addf %612, %614 : vector<1x64xf32>
    %c135 = arith.constant 135 : index
    %616 = memref.load %arg0[%c135] : memref<144xf32, #tpu.memory_space<smem>>
    %617 = vector.broadcast %616 : f32 to vector<1x64xf32>
    %618 = arith.mulf %617, %573 : vector<1x64xf32>
    %c136 = arith.constant 136 : index
    %619 = memref.load %arg0[%c136] : memref<144xf32, #tpu.memory_space<smem>>
    %620 = vector.broadcast %619 : f32 to vector<1x64xf32>
    %621 = arith.mulf %620, %587 : vector<1x64xf32>
    %622 = arith.addf %618, %621 : vector<1x64xf32>
    %c137 = arith.constant 137 : index
    %623 = memref.load %arg0[%c137] : memref<144xf32, #tpu.memory_space<smem>>
    %624 = vector.broadcast %623 : f32 to vector<1x64xf32>
    %625 = arith.mulf %624, %601 : vector<1x64xf32>
    %626 = arith.addf %622, %625 : vector<1x64xf32>
    %c142 = arith.constant 142 : index
    %627 = memref.load %arg0[%c142] : memref<144xf32, #tpu.memory_space<smem>>
    %628 = vector.broadcast %627 : f32 to vector<1x64xf32>
    %629 = arith.addf %626, %628 : vector<1x64xf32>
    %c138 = arith.constant 138 : index
    %630 = memref.load %arg0[%c138] : memref<144xf32, #tpu.memory_space<smem>>
    %631 = vector.broadcast %630 : f32 to vector<1x64xf32>
    %632 = arith.mulf %631, %573 : vector<1x64xf32>
    %c139 = arith.constant 139 : index
    %633 = memref.load %arg0[%c139] : memref<144xf32, #tpu.memory_space<smem>>
    %634 = vector.broadcast %633 : f32 to vector<1x64xf32>
    %635 = arith.mulf %634, %587 : vector<1x64xf32>
    %636 = arith.addf %632, %635 : vector<1x64xf32>
    %c140 = arith.constant 140 : index
    %637 = memref.load %arg0[%c140] : memref<144xf32, #tpu.memory_space<smem>>
    %638 = vector.broadcast %637 : f32 to vector<1x64xf32>
    %639 = arith.mulf %638, %601 : vector<1x64xf32>
    %640 = arith.addf %636, %639 : vector<1x64xf32>
    %c143 = arith.constant 143 : index
    %641 = memref.load %arg0[%c143] : memref<144xf32, #tpu.memory_space<smem>>
    %642 = vector.broadcast %641 : f32 to vector<1x64xf32>
    %643 = arith.addf %640, %642 : vector<1x64xf32>
    %cst_55 = arith.constant -8.000000e+00 : f32
    %644 = vector.broadcast %cst_55 : f32 to vector<1x64xf32>
    %645 = arith.subf %615, %644 : vector<1x64xf32>
    %cst_56 = arith.constant 1.000000e+00 : f32
    %646 = vector.broadcast %cst_56 : f32 to vector<1x64xf32>
    %647 = arith.divf %645, %646 : vector<1x64xf32>
    %648 = arith.fptosi %647 : vector<1x64xf32> to vector<1x64xi32>
    %cst_57 = arith.constant -8.000000e+00 : f32
    %649 = vector.broadcast %cst_57 : f32 to vector<1x64xf32>
    %650 = arith.subf %629, %649 : vector<1x64xf32>
    %cst_58 = arith.constant 1.000000e+00 : f32
    %651 = vector.broadcast %cst_58 : f32 to vector<1x64xf32>
    %652 = arith.divf %650, %651 : vector<1x64xf32>
    %653 = arith.fptosi %652 : vector<1x64xf32> to vector<1x64xi32>
    %cst_59 = arith.constant -8.000000e+00 : f32
    %654 = vector.broadcast %cst_59 : f32 to vector<1x64xf32>
    %655 = arith.subf %643, %654 : vector<1x64xf32>
    %cst_60 = arith.constant 1.600000e+01 : f32
    %656 = vector.broadcast %cst_60 : f32 to vector<1x64xf32>
    %657 = arith.divf %655, %656 : vector<1x64xf32>
    %658 = arith.fptosi %657 : vector<1x64xf32> to vector<1x64xi32>
    %c0_i32_61 = arith.constant 0 : i32
    %659 = vector.broadcast %c0_i32_61 : i32 to vector<1x64xi32>
    %660 = arith.cmpi sge, %648, %659 : vector<1x64xi32>
    %c16_i32_62 = arith.constant 16 : i32
    %661 = vector.broadcast %c16_i32_62 : i32 to vector<1x64xi32>
    %662 = arith.cmpi slt, %648, %661 : vector<1x64xi32>
    %663 = arith.andi %660, %662 : vector<1x64xi1>
    %c0_i32_63 = arith.constant 0 : i32
    %664 = vector.broadcast %c0_i32_63 : i32 to vector<1x64xi32>
    %665 = arith.cmpi sge, %653, %664 : vector<1x64xi32>
    %666 = arith.andi %663, %665 : vector<1x64xi1>
    %c16_i32_64 = arith.constant 16 : i32
    %667 = vector.broadcast %c16_i32_64 : i32 to vector<1x64xi32>
    %668 = arith.cmpi slt, %653, %667 : vector<1x64xi32>
    %669 = arith.andi %666, %668 : vector<1x64xi1>
    %c0_i32_65 = arith.constant 0 : i32
    %670 = vector.broadcast %c0_i32_65 : i32 to vector<1x64xi32>
    %671 = arith.cmpi sge, %658, %670 : vector<1x64xi32>
    %672 = arith.andi %669, %671 : vector<1x64xi1>
    %c1_i32_66 = arith.constant 1 : i32
    %673 = vector.broadcast %c1_i32_66 : i32 to vector<1x64xi32>
    %674 = arith.cmpi slt, %658, %673 : vector<1x64xi32>
    %675 = arith.andi %672, %674 : vector<1x64xi1>
    %c1_i32_67 = arith.constant 1 : i32
    %676 = vector.broadcast %c1_i32_67 : i32 to vector<1x64xi32>
    %677 = arith.addi %676, %658 : vector<1x64xi32>
    %c16_i32_68 = arith.constant 16 : i32
    %678 = vector.broadcast %c16_i32_68 : i32 to vector<1x64xi32>
    %679 = arith.muli %677, %678 : vector<1x64xi32>
    %680 = arith.addi %679, %648 : vector<1x64xi32>
    %c16_i32_69 = arith.constant 16 : i32
    %681 = vector.broadcast %c16_i32_69 : i32 to vector<1x64xi32>
    %682 = arith.muli %680, %681 : vector<1x64xi32>
    %683 = arith.addi %682, %653 : vector<1x64xi32>
    %c-1_i32_70 = arith.constant -1 : i32
    %684 = vector.broadcast %c-1_i32_70 : i32 to vector<1x64xi32>
    %685 = arith.select %675, %683, %684 : vector<1x64xi1>, vector<1x64xi32>
    %c3_71 = arith.constant 3 : index
    %c0_72 = arith.constant 0 : index
    %686 = vector.load %arg4[%c3_71, %c0_72] : memref<4x64xi32, #tpu.memory_space<vmem>>, vector<1x64xi32>
    tpu.vector_store %arg4[%c3_71, %c0_72], %685 {strides = array<i32>} : memref<4x64xi32, #tpu.memory_space<vmem>>, vector<1x64xi32>,
    return
  }
}

</mosaic_0001>

<llo_original>
// kernel: tpu_custom_call.1
$region0: #{tpu_custom_call.1}
  #allocation0 [shape = 'u32[]', space=smem, size = 0x4, offset = 0x4, fixed_abs, tag = 'smem constant byte address 0x4 - core index']
  #allocation1 [shape = 'u32[144,128]{1,0:T(1,128)}', space=vmem, size = 0x12000, scoped, tag = 'internal scratch']
  %s0 = inlined_call_operand.hbm [shape: f32[144], index: 0, kind: input, shape index: {}]
  %s1 = inlined_call_operand.vmem [shape: f32[1,64], index: 1, kind: input, shape index: {}]
  %s2 = inlined_call_operand.vmem [shape: f32[1,64], index: 2, kind: input, shape index: {}]
  %s3 = inlined_call_operand.vmem [shape: f32[1,64], index: 3, kind: input, shape index: {}]
  %s4 = inlined_call_operand.hbm [shape: s32[4,64], index: 4, kind: output, shape index: {}]
  %s5 = sld [smem:[#allocation0]]
  $region30: #{tpu_custom_call.1} parent=0
    _
  %s7 = ssub.s32 1, %s5
  %s8 = scalar_select 0, %s7, %s5
  $region1: #{tpu_custom_call.1} parent=0
    #allocation2 [shape = 'u8[1024]{0}', space=smem, size = 0x400, scoped, tag = 'input window, operand 0, single buffered']
    #allocation3 [shape = 's32[1]{0}', space=sflag, size = 0x4, scoped, tag = 'scoped memory for tpu_custom_call.1']
    #allocation4 [shape = 's32[1]{0}', space=sflag, size = 0x4, scoped, tag = 'scoped memory for tpu_custom_call.1']
    #allocation5 [shape = 'u8[2048]{0}', space=vmem, size = 0x800, scoped, tag = 'output window, operand 0, single buffered']
    %9 = vsyncpa [#allocation4], 0
    %10 = vsyncpa [#allocation3], 0
    // Predicated region
    $region2: #{tpu_custom_call.1} parent=1 // pred_check
      _
    $region3: #{tpu_custom_call.1} parent=1 // pred_check_branch
      %12 = sbr.rel (0) target = $region5
    $region4: #{tpu_custom_call.1} parent=1 // pred_region
      %s14 = ssub.s32 32, 32
      %15 = vsyncadd [#allocation4], %s14
      %18 = dma.hbm_to_smem %s0, 32, [#allocation2], [#allocation4]
    $region5: #{tpu_custom_call.1} parent=1 // pred_fallthru
      _
    // Predicated region
    $region6: #{tpu_custom_call.1} parent=1 // pred_check
      _
    $region7: #{tpu_custom_call.1} parent=1 // pred_check_branch
      %20 = sbr.rel (0) target = $region9
    $region8: #{tpu_custom_call.1} parent=1 // pred_region
      _
    $region9: #{tpu_custom_call.1} parent=1 // pred_fallthru
      _
    // Predicated region
    $region10: #{tpu_custom_call.1} parent=1 // pred_check
      _
    $region11: #{tpu_custom_call.1} parent=1 // pred_check_branch
      %22 = sbr.rel (0) target = $region13
    $region12: #{tpu_custom_call.1} parent=1 // pred_region
      _
    $region13: #{tpu_custom_call.1} parent=1 // pred_fallthru
      _
    // Predicated region
    $region14: #{tpu_custom_call.1} parent=1 // pred_check
      _
    $region15: #{tpu_custom_call.1} parent=1 // pred_check_branch
      %24 = sbr.rel (0) target = $region17
    $region16: #{tpu_custom_call.1} parent=1 // pred_region
      _
    $region17: #{tpu_custom_call.1} parent=1 // pred_fallthru
      _
    // Predicated region
    $region18: #{tpu_custom_call.1} parent=1 // pred_check
      _
    $region19: #{tpu_custom_call.1} parent=1 // pred_check_branch
      %26 = sbr.rel (0) target = $region21
    $region20: #{tpu_custom_call.1} parent=1 // pred_region
      %27 = dma.done [#allocation4], 32
    $region21: #{tpu_custom_call.1} parent=1 // pred_fallthru
      _
    %28 = sfence
    %v29 = vld [vmem:[%s1] sm:$0x1]
    %v30 = vld [vmem:[%s2] sm:$0x1]
    %v31 = vld [vmem:[%s3] sm:$0x1]
    %s32 = sld [smem:[#allocation2 + $0x12]]
    %v33 = vstv %s32
    %v34 = vsub.f32 %v29, %v33
    %s35 = sld [smem:[#allocation2 + $0x13]]
    %v36 = vstv %s35
    %v37 = vsub.f32 %v30, %v36
    %s38 = sld [smem:[#allocation2 + $0x14]]
    %v39 = vstv %s38
    %v40 = vsub.f32 %v31, %v39
    %s41 = sld [smem:[#allocation2]]
    %v42 = vstv %s41
    %v43 = vmul.f32 %v42, %v34
    %s44 = sld [smem:[#allocation2 + $0x1]]
    %v45 = vstv %s44
    %v46 = vmul.f32 %v45, %v37
    %v47 = vadd.f32 %v43, %v46
    %s48 = sld [smem:[#allocation2 + $0x2]]
    %v49 = vstv %s48
    %v50 = vmul.f32 %v49, %v40
    %v51 = vadd.f32 %v47, %v50
    %s52 = sld [smem:[#allocation2 + $0x3]]
    %v53 = vstv %s52
    %v54 = vmul.f32 %v53, %v34
    %s55 = sld [smem:[#allocation2 + $0x4]]
    %v56 = vstv %s55
    %v57 = vmul.f32 %v56, %v37
    %v58 = vadd.f32 %v54, %v57
    %s59 = sld [smem:[#allocation2 + $0x5]]
    %v60 = vstv %s59
    %v61 = vmul.f32 %v60, %v40
    %v62 = vadd.f32 %v58, %v61
    %s63 = sld [smem:[#allocation2 + $0x6]]
    %v64 = vstv %s63
    %v65 = vmul.f32 %v64, %v34
    %s66 = sld [smem:[#allocation2 + $0x7]]
    %v67 = vstv %s66
    %v68 = vmul.f32 %v67, %v37
    %v69 = vadd.f32 %v65, %v68
    %s70 = sld [smem:[#allocation2 + $0x8]]
    %v71 = vstv %s70
    %v72 = vmul.f32 %v71, %v40
    %v73 = vadd.f32 %v69, %v72
    %v74 = vmul.f32 %v51, %v73
    %v75 = vmul.f32 %v62, %v73
    %s76 = sld [smem:[#allocation2 + $0x9]]
    %v77 = vstv %s76
    %v78 = vmul.f32 %v77, %v74
    %s79 = sld [smem:[#allocation2 + $0xa]]
    %v80 = vstv %s79
    %v81 = vmul.f32 %v80, %v75
    %v82 = vadd.f32 %v78, %v81
    %s83 = sld [smem:[#allocation2 + $0xb]]
    %v84 = vstv %s83
    %v85 = vmul.f32 %v84, %v73
    %v86 = vadd.f32 %v82, %v85
    %s87 = sld [smem:[#allocation2 + $0x15]]
    %v88 = vstv %s87
    %v89 = vadd.f32 %v86, %v88
    %s90 = sld [smem:[#allocation2 + $0xc]]
    %v91 = vstv %s90
    %v92 = vmul.f32 %v91, %v74
    %s93 = sld [smem:[#allocation2 + $0xd]]
    %v94 = vstv %s93
    %v95 = vmul.f32 %v94, %v75
    %v96 = vadd.f32 %v92, %v95
    %s97 = sld [smem:[#allocation2 + $0xe]]
    %v98 = vstv %s97
    %v99 = vmul.f32 %v98, %v73
    %v100 = vadd.f32 %v96, %v99
    %s101 = sld [smem:[#allocation2 + $0x16]]
    %v102 = vstv %s101
    %v103 = vadd.f32 %v100, %v102
    %s104 = sld [smem:[#allocation2 + $0xf]]
    %v105 = vstv %s104
    %v106 = vmul.f32 %v105, %v74
    %s107 = sld [smem:[#allocation2 + $0x10]]
    %v108 = vstv %s107
    %v109 = vmul.f32 %v108, %v75
    %v110 = vadd.f32 %v106, %v109
    %s111 = sld [smem:[#allocation2 + $0x11]]
    %v112 = vstv %s111
    %v113 = vmul.f32 %v112, %v73
    %v114 = vadd.f32 %v110, %v113
    %s115 = sld [smem:[#allocation2 + $0x17]]
    %v116 = vstv %s115
    %v117 = vadd.f32 %v114, %v116
    %s118 = sld [smem:[#allocation2 + $0x18]]
    %v119 = vstv %s118
    %v120 = vmul.f32 %v119, %v89
    %s121 = sld [smem:[#allocation2 + $0x19]]
    %v122 = vstv %s121
    %v123 = vmul.f32 %v122, %v103
    %v124 = vadd.f32 %v120, %v123
    %s125 = sld [smem:[#allocation2 + $0x1a]]
    %v126 = vstv %s125
    %v127 = vmul.f32 %v126, %v117
    %v128 = vadd.f32 %v124, %v127
    %s129 = sld [smem:[#allocation2 + $0x21]]
    %v130 = vstv %s129
    %v131 = vadd.f32 %v128, %v130
    %s132 = sld [smem:[#allocation2 + $0x1b]]
    %v133 = vstv %s132
    %v134 = vmul.f32 %v133, %v89
    %s135 = sld [smem:[#allocation2 + $0x1c]]
    %v136 = vstv %s135
    %v137 = vmul.f32 %v136, %v103
    %v138 = vadd.f32 %v134, %v137
    %s139 = sld [smem:[#allocation2 + $0x1d]]
    %v140 = vstv %s139
    %v141 = vmul.f32 %v140, %v117
    %v142 = vadd.f32 %v138, %v141
    %s143 = sld [smem:[#allocation2 + $0x22]]
    %v144 = vstv %s143
    %v145 = vadd.f32 %v142, %v144
    %s146 = sld [smem:[#allocation2 + $0x1e]]
    %v147 = vstv %s146
    %v148 = vmul.f32 %v147, %v89
    %s149 = sld [smem:[#allocation2 + $0x1f]]
    %v150 = vstv %s149
    %v151 = vmul.f32 %v150, %v103
    %v152 = vadd.f32 %v148, %v151
    %s153 = sld [smem:[#allocation2 + $0x20]]
    %v154 = vstv %s153
    %v155 = vmul.f32 %v154, %v117
    %v156 = vadd.f32 %v152, %v155
    %s157 = sld [smem:[#allocation2 + $0x23]]
    %v158 = vstv %s157
    %v159 = vadd.f32 %v156, %v158
    %v160 = vsub.f32 %v131, -8.0
    %v161 = vcvt.f32.s32.to.zero.pseudo %v160
    %v162 = vsub.f32 %v145, -8.0
    %v163 = vcvt.f32.s32.to.zero.pseudo %v162
    %v164 = vsub.f32 %v159, -8.0
    %v165 = vrcp.pop 16.0
    %v166 = vmul.f32 %v164, %v165
    %v167 = vcvt.f32.s32.to.zero.pseudo %v166
    %vm168 = vcmp.ge.s32.totalorder %v161, 0
    %vm169 = vcmp.lt.s32.totalorder %v161, 16
    %vm170 = vmand %vm168, %vm169
    %vm171 = vcmp.ge.s32.totalorder %v163, 0
    %vm172 = vmand %vm170, %vm171
    %vm173 = vcmp.lt.s32.totalorder %v163, 16
    %vm174 = vmand %vm172, %vm173
    %vm175 = vcmp.ge.s32.totalorder %v167, 0
    %vm176 = vmand %vm174, %vm175
    %vm177 = vcmp.lt.s32.totalorder %v167, 1
    %vm178 = vmand %vm176, %vm177
    %v179 = vmul.u32 %v167, 16
    %v180 = vadd.s32 %v179, %v161
    %v181 = vmul.u32 %v180, 16
    %v182 = vadd.s32 %v181, %v163
    %v183 = vsel %vm178, %v182, 4294967295
    %vm184 = vcmask 516096
    %185 = vst.msk [vmem:[#allocation5] sm:$0x1] %vm184, %v183
    %s186 = sld [smem:[#allocation2 + $0x36]]
    %v187 = vstv %s186
    %v188 = vsub.f32 %v29, %v187
    %s189 = sld [smem:[#allocation2 + $0x37]]
    %v190 = vstv %s189
    %v191 = vsub.f32 %v30, %v190
    %s192 = sld [smem:[#allocation2 + $0x38]]
    %v193 = vstv %s192
    %v194 = vsub.f32 %v31, %v193
    %s195 = sld [smem:[#allocation2 + $0x24]]
    %v196 = vstv %s195
    %v197 = vmul.f32 %v196, %v188
    %s198 = sld [smem:[#allocation2 + $0x25]]
    %v199 = vstv %s198
    %v200 = vmul.f32 %v199, %v191
    %v201 = vadd.f32 %v197, %v200
    %s202 = sld [smem:[#allocation2 + $0x26]]
    %v203 = vstv %s202
    %v204 = vmul.f32 %v203, %v194
    %v205 = vadd.f32 %v201, %v204
    %s206 = sld [smem:[#allocation2 + $0x27]]
    %v207 = vstv %s206
    %v208 = vmul.f32 %v207, %v188
    %s209 = sld [smem:[#allocation2 + $0x28]]
    %v210 = vstv %s209
    %v211 = vmul.f32 %v210, %v191
    %v212 = vadd.f32 %v208, %v211
    %s213 = sld [smem:[#allocation2 + $0x29]]
    %v214 = vstv %s213
    %v215 = vmul.f32 %v214, %v194
    %v216 = vadd.f32 %v212, %v215
    %s217 = sld [smem:[#allocation2 + $0x2a]]
    %v218 = vstv %s217
    %v219 = vmul.f32 %v218, %v188
    %s220 = sld [smem:[#allocation2 + $0x2b]]
    %v221 = vstv %s220
    %v222 = vmul.f32 %v221, %v191
    %v223 = vadd.f32 %v219, %v222
    %s224 = sld [smem:[#allocation2 + $0x2c]]
    %v225 = vstv %s224
    %v226 = vmul.f32 %v225, %v194
    %v227 = vadd.f32 %v223, %v226
    %v228 = vmul.f32 %v205, %v227
    %v229 = vmul.f32 %v216, %v227
    %s230 = sld [smem:[#allocation2 + $0x2d]]
    %v231 = vstv %s230
    %v232 = vmul.f32 %v231, %v228
    %s233 = sld [smem:[#allocation2 + $0x2e]]
    %v234 = vstv %s233
    %v235 = vmul.f32 %v234, %v229
    %v236 = vadd.f32 %v232, %v235
    %s237 = sld [smem:[#allocation2 + $0x2f]]
    %v238 = vstv %s237
    %v239 = vmul.f32 %v238, %v227
    %v240 = vadd.f32 %v236, %v239
    %s241 = sld [smem:[#allocation2 + $0x39]]
    %v242 = vstv %s241
    %v243 = vadd.f32 %v240, %v242
    %s244 = sld [smem:[#allocation2 + $0x30]]
    %v245 = vstv %s244
    %v246 = vmul.f32 %v245, %v228
    %s247 = sld [smem:[#allocation2 + $0x31]]
    %v248 = vstv %s247
    %v249 = vmul.f32 %v248, %v229
    %v250 = vadd.f32 %v246, %v249
    %s251 = sld [smem:[#allocation2 + $0x32]]
    %v252 = vstv %s251
    %v253 = vmul.f32 %v252, %v227
    %v254 = vadd.f32 %v250, %v253
    %s255 = sld [smem:[#allocation2 + $0x3a]]
    %v256 = vstv %s255
    %v257 = vadd.f32 %v254, %v256
    %s258 = sld [smem:[#allocation2 + $0x33]]
    %v259 = vstv %s258
    %v260 = vmul.f32 %v259, %v228
    %s261 = sld [smem:[#allocation2 + $0x34]]
    %v262 = vstv %s261
    %v263 = vmul.f32 %v262, %v229
    %v264 = vadd.f32 %v260, %v263
    %s265 = sld [smem:[#allocation2 + $0x35]]
    %v266 = vstv %s265
    %v267 = vmul.f32 %v266, %v227
    %v268 = vadd.f32 %v264, %v267
    %s269 = sld [smem:[#allocation2 + $0x3b]]
    %v270 = vstv %s269
    %v271 = vadd.f32 %v268, %v270
    %s272 = sld [smem:[#allocation2 + $0x3c]]
    %v273 = vstv %s272
    %v274 = vmul.f32 %v273, %v243
    %s275 = sld [smem:[#allocation2 + $0x3d]]
    %v276 = vstv %s275
    %v277 = vmul.f32 %v276, %v257
    %v278 = vadd.f32 %v274, %v277
    %s279 = sld [smem:[#allocation2 + $0x3e]]
    %v280 = vstv %s279
    %v281 = vmul.f32 %v280, %v271
    %v282 = vadd.f32 %v278, %v281
    %s283 = sld [smem:[#allocation2 + $0x45]]
    %v284 = vstv %s283
    %v285 = vadd.f32 %v282, %v284
    %s286 = sld [smem:[#allocation2 + $0x3f]]
    %v287 = vstv %s286
    %v288 = vmul.f32 %v287, %v243
    %s289 = sld [smem:[#allocation2 + $0x40]]
    %v290 = vstv %s289
    %v291 = vmul.f32 %v290, %v257
    %v292 = vadd.f32 %v288, %v291
    %s293 = sld [smem:[#allocation2 + $0x41]]
    %v294 = vstv %s293
    %v295 = vmul.f32 %v294, %v271
    %v296 = vadd.f32 %v292, %v295
    %s297 = sld [smem:[#allocation2 + $0x46]]
    %v298 = vstv %s297
    %v299 = vadd.f32 %v296, %v298
    %s300 = sld [smem:[#allocation2 + $0x42]]
    %v301 = vstv %s300
    %v302 = vmul.f32 %v301, %v243
    %s303 = sld [smem:[#allocation2 + $0x43]]
    %v304 = vstv %s303
    %v305 = vmul.f32 %v304, %v257
    %v306 = vadd.f32 %v302, %v305
    %s307 = sld [smem:[#allocation2 + $0x44]]
    %v308 = vstv %s307
    %v309 = vmul.f32 %v308, %v271
    %v310 = vadd.f32 %v306, %v309
    %s311 = sld [smem:[#allocation2 + $0x47]]
    %v312 = vstv %s311
    %v313 = vadd.f32 %v310, %v312
    %v314 = vsub.f32 %v285, -8.0
    %v315 = vcvt.f32.s32.to.zero.pseudo %v314
    %v316 = vsub.f32 %v299, -8.0
    %v317 = vcvt.f32.s32.to.zero.pseudo %v316
    %v318 = vsub.f32 %v313, -8.0
    %v319 = vmul.f32 %v318, %v165
    %v320 = vcvt.f32.s32.to.zero.pseudo %v319
    %vm321 = vcmp.ge.s32.totalorder %v315, 0
    %vm322 = vcmp.lt.s32.totalorder %v315, 16
    %vm323 = vmand %vm321, %vm322
    %vm324 = vcmp.ge.s32.totalorder %v317, 0
    %vm325 = vmand %vm323, %vm324
    %vm326 = vcmp.lt.s32.totalorder %v317, 16
    %vm327 = vmand %vm325, %vm326
    %vm328 = vcmp.ge.s32.totalorder %v320, 0
    %vm329 = vmand %vm327, %vm328
    %vm330 = vcmp.lt.s32.totalorder %v320, 1
    %vm331 = vmand %vm329, %vm330
    %v332 = vmul.u32 %v320, 16
    %v333 = vadd.s32 %v332, %v315
    %v334 = vmul.u32 %v333, 16
    %v335 = vadd.s32 %v334, %v317
    %v336 = vsel %vm331, %v335, 4294967295
    %337 = vst.msk [vmem:[#allocation5 + $0x1] sm:$0x1] %vm184, %v336
    %s338 = sld [smem:[#allocation2 + $0x5a]]
    %v339 = vstv %s338
    %v340 = vsub.f32 %v29, %v339
    %s341 = sld [smem:[#allocation2 + $0x5b]]
    %v342 = vstv %s341
    %v343 = vsub.f32 %v30, %v342
    %s344 = sld [smem:[#allocation2 + $0x5c]]
    %v345 = vstv %s344
    %v346 = vsub.f32 %v31, %v345
    %s347 = sld [smem:[#allocation2 + $0x48]]
    %v348 = vstv %s347
    %v349 = vmul.f32 %v348, %v340
    %s350 = sld [smem:[#allocation2 + $0x49]]
    %v351 = vstv %s350
    %v352 = vmul.f32 %v351, %v343
    %v353 = vadd.f32 %v349, %v352
    %s354 = sld [smem:[#allocation2 + $0x4a]]
    %v355 = vstv %s354
    %v356 = vmul.f32 %v355, %v346
    %v357 = vadd.f32 %v353, %v356
    %s358 = sld [smem:[#allocation2 + $0x4b]]
    %v359 = vstv %s358
    %v360 = vmul.f32 %v359, %v340
    %s361 = sld [smem:[#allocation2 + $0x4c]]
    %v362 = vstv %s361
    %v363 = vmul.f32 %v362, %v343
    %v364 = vadd.f32 %v360, %v363
    %s365 = sld [smem:[#allocation2 + $0x4d]]
    %v366 = vstv %s365
    %v367 = vmul.f32 %v366, %v346
    %v368 = vadd.f32 %v364, %v367
    %s369 = sld [smem:[#allocation2 + $0x4e]]
    %v370 = vstv %s369
    %v371 = vmul.f32 %v370, %v340
    %s372 = sld [smem:[#allocation2 + $0x4f]]
    %v373 = vstv %s372
    %v374 = vmul.f32 %v373, %v343
    %v375 = vadd.f32 %v371, %v374
    %s376 = sld [smem:[#allocation2 + $0x50]]
    %v377 = vstv %s376
    %v378 = vmul.f32 %v377, %v346
    %v379 = vadd.f32 %v375, %v378
    %v380 = vmul.f32 %v357, %v379
    %v381 = vmul.f32 %v368, %v379
    %s382 = sld [smem:[#allocation2 + $0x51]]
    %v383 = vstv %s382
    %v384 = vmul.f32 %v383, %v380
    %s385 = sld [smem:[#allocation2 + $0x52]]
    %v386 = vstv %s385
    %v387 = vmul.f32 %v386, %v381
    %v388 = vadd.f32 %v384, %v387
    %s389 = sld [smem:[#allocation2 + $0x53]]
    %v390 = vstv %s389
    %v391 = vmul.f32 %v390, %v379
    %v392 = vadd.f32 %v388, %v391
    %s393 = sld [smem:[#allocation2 + $0x5d]]
    %v394 = vstv %s393
    %v395 = vadd.f32 %v392, %v394
    %s396 = sld [smem:[#allocation2 + $0x54]]
    %v397 = vstv %s396
    %v398 = vmul.f32 %v397, %v380
    %s399 = sld [smem:[#allocation2 + $0x55]]
    %v400 = vstv %s399
    %v401 = vmul.f32 %v400, %v381
    %v402 = vadd.f32 %v398, %v401
    %s403 = sld [smem:[#allocation2 + $0x56]]
    %v404 = vstv %s403
    %v405 = vmul.f32 %v404, %v379
    %v406 = vadd.f32 %v402, %v405
    %s407 = sld [smem:[#allocation2 + $0x5e]]
    %v408 = vstv %s407
    %v409 = vadd.f32 %v406, %v408
    %s410 = sld [smem:[#allocation2 + $0x57]]
    %v411 = vstv %s410
    %v412 = vmul.f32 %v411, %v380
    %s413 = sld [smem:[#allocation2 + $0x58]]
    %v414 = vstv %s413
    %v415 = vmul.f32 %v414, %v381
    %v416 = vadd.f32 %v412, %v415
    %s417 = sld [smem:[#allocation2 + $0x59]]
    %v418 = vstv %s417
    %v419 = vmul.f32 %v418, %v379
    %v420 = vadd.f32 %v416, %v419
    %s421 = sld [smem:[#allocation2 + $0x5f]]
    %v422 = vstv %s421
    %v423 = vadd.f32 %v420, %v422
    %s424 = sld [smem:[#allocation2 + $0x60]]
    %v425 = vstv %s424
    %v426 = vmul.f32 %v425, %v395
    %s427 = sld [smem:[#allocation2 + $0x61]]
    %v428 = vstv %s427
    %v429 = vmul.f32 %v428, %v409
    %v430 = vadd.f32 %v426, %v429
    %s431 = sld [smem:[#allocation2 + $0x62]]
    %v432 = vstv %s431
    %v433 = vmul.f32 %v432, %v423
    %v434 = vadd.f32 %v430, %v433
    %s435 = sld [smem:[#allocation2 + $0x69]]
    %v436 = vstv %s435
    %v437 = vadd.f32 %v434, %v436
    %s438 = sld [smem:[#allocation2 + $0x63]]
    %v439 = vstv %s438
    %v440 = vmul.f32 %v439, %v395
    %s441 = sld [smem:[#allocation2 + $0x64]]
    %v442 = vstv %s441
    %v443 = vmul.f32 %v442, %v409
    %v444 = vadd.f32 %v440, %v443
    %s445 = sld [smem:[#allocation2 + $0x65]]
    %v446 = vstv %s445
    %v447 = vmul.f32 %v446, %v423
    %v448 = vadd.f32 %v444, %v447
    %s449 = sld [smem:[#allocation2 + $0x6a]]
    %v450 = vstv %s449
    %v451 = vadd.f32 %v448, %v450
    %s452 = sld [smem:[#allocation2 + $0x66]]
    %v453 = vstv %s452
    %v454 = vmul.f32 %v453, %v395
    %s455 = sld [smem:[#allocation2 + $0x67]]
    %v456 = vstv %s455
    %v457 = vmul.f32 %v456, %v409
    %v458 = vadd.f32 %v454, %v457
    %s459 = sld [smem:[#allocation2 + $0x68]]
    %v460 = vstv %s459
    %v461 = vmul.f32 %v460, %v423
    %v462 = vadd.f32 %v458, %v461
    %s463 = sld [smem:[#allocation2 + $0x6b]]
    %v464 = vstv %s463
    %v465 = vadd.f32 %v462, %v464
    %v466 = vsub.f32 %v437, -8.0
    %v467 = vcvt.f32.s32.to.zero.pseudo %v466
    %v468 = vsub.f32 %v451, -8.0
    %v469 = vcvt.f32.s32.to.zero.pseudo %v468
    %v470 = vsub.f32 %v465, -8.0
    %v471 = vmul.f32 %v470, %v165
    %v472 = vcvt.f32.s32.to.zero.pseudo %v471
    %vm473 = vcmp.ge.s32.totalorder %v467, 0
    %vm474 = vcmp.lt.s32.totalorder %v467, 16
    %vm475 = vmand %vm473, %vm474
    %vm476 = vcmp.ge.s32.totalorder %v469, 0
    %vm477 = vmand %vm475, %vm476
    %vm478 = vcmp.lt.s32.totalorder %v469, 16
    %vm479 = vmand %vm477, %vm478
    %vm480 = vcmp.ge.s32.totalorder %v472, 0
    %vm481 = vmand %vm479, %vm480
    %vm482 = vcmp.lt.s32.totalorder %v472, 1
    %vm483 = vmand %vm481, %vm482
    %v484 = vadd.s32 %v472, 1
    %v485 = vmul.u32 %v484, 16
    %v486 = vadd.s32 %v485, %v467
    %v487 = vmul.u32 %v486, 16
    %v488 = vadd.s32 %v487, %v469
    %v489 = vsel %vm483, %v488, 4294967295
    %490 = vst.msk [vmem:[#allocation5 + $0x2] sm:$0x1] %vm184, %v489
    %s491 = sld [smem:[#allocation2 + $0x7e]]
    %v492 = vstv %s491
    %v493 = vsub.f32 %v29, %v492
    %s494 = sld [smem:[#allocation2 + $0x7f]]
    %v495 = vstv %s494
    %v496 = vsub.f32 %v30, %v495
    %s497 = sld [smem:[#allocation2 + $0x80]]
    %v498 = vstv %s497
    %v499 = vsub.f32 %v31, %v498
    %s500 = sld [smem:[#allocation2 + $0x6c]]
    %v501 = vstv %s500
    %v502 = vmul.f32 %v501, %v493
    %s503 = sld [smem:[#allocation2 + $0x6d]]
    %v504 = vstv %s503
    %v505 = vmul.f32 %v504, %v496
    %v506 = vadd.f32 %v502, %v505
    %s507 = sld [smem:[#allocation2 + $0x6e]]
    %v508 = vstv %s507
    %v509 = vmul.f32 %v508, %v499
    %v510 = vadd.f32 %v506, %v509
    %s511 = sld [smem:[#allocation2 + $0x6f]]
    %v512 = vstv %s511
    %v513 = vmul.f32 %v512, %v493
    %s514 = sld [smem:[#allocation2 + $0x70]]
    %v515 = vstv %s514
    %v516 = vmul.f32 %v515, %v496
    %v517 = vadd.f32 %v513, %v516
    %s518 = sld [smem:[#allocation2 + $0x71]]
    %v519 = vstv %s518
    %v520 = vmul.f32 %v519, %v499
    %v521 = vadd.f32 %v517, %v520
    %s522 = sld [smem:[#allocation2 + $0x72]]
    %v523 = vstv %s522
    %v524 = vmul.f32 %v523, %v493
    %s525 = sld [smem:[#allocation2 + $0x73]]
    %v526 = vstv %s525
    %v527 = vmul.f32 %v526, %v496
    %v528 = vadd.f32 %v524, %v527
    %s529 = sld [smem:[#allocation2 + $0x74]]
    %v530 = vstv %s529
    %v531 = vmul.f32 %v530, %v499
    %v532 = vadd.f32 %v528, %v531
    %v533 = vmul.f32 %v510, %v532
    %v534 = vmul.f32 %v521, %v532
    %s535 = sld [smem:[#allocation2 + $0x75]]
    %v536 = vstv %s535
    %v537 = vmul.f32 %v536, %v533
    %s538 = sld [smem:[#allocation2 + $0x76]]
    %v539 = vstv %s538
    %v540 = vmul.f32 %v539, %v534
    %v541 = vadd.f32 %v537, %v540
    %s542 = sld [smem:[#allocation2 + $0x77]]
    %v543 = vstv %s542
    %v544 = vmul.f32 %v543, %v532
    %v545 = vadd.f32 %v541, %v544
    %s546 = sld [smem:[#allocation2 + $0x81]]
    %v547 = vstv %s546
    %v548 = vadd.f32 %v545, %v547
    %s549 = sld [smem:[#allocation2 + $0x78]]
    %v550 = vstv %s549
    %v551 = vmul.f32 %v550, %v533
    %s552 = sld [smem:[#allocation2 + $0x79]]
    %v553 = vstv %s552
    %v554 = vmul.f32 %v553, %v534
    %v555 = vadd.f32 %v551, %v554
    %s556 = sld [smem:[#allocation2 + $0x7a]]
    %v557 = vstv %s556
    %v558 = vmul.f32 %v557, %v532
    %v559 = vadd.f32 %v555, %v558
    %s560 = sld [smem:[#allocation2 + $0x82]]
    %v561 = vstv %s560
    %v562 = vadd.f32 %v559, %v561
    %s563 = sld [smem:[#allocation2 + $0x7b]]
    %v564 = vstv %s563
    %v565 = vmul.f32 %v564, %v533
    %s566 = sld [smem:[#allocation2 + $0x7c]]
    %v567 = vstv %s566
    %v568 = vmul.f32 %v567, %v534
    %v569 = vadd.f32 %v565, %v568
    %s570 = sld [smem:[#allocation2 + $0x7d]]
    %v571 = vstv %s570
    %v572 = vmul.f32 %v571, %v532
    %v573 = vadd.f32 %v569, %v572
    %s574 = sld [smem:[#allocation2 + $0x83]]
    %v575 = vstv %s574
    %v576 = vadd.f32 %v573, %v575
    %s577 = sld [smem:[#allocation2 + $0x84]]
    %v578 = vstv %s577
    %v579 = vmul.f32 %v578, %v548
    %s580 = sld [smem:[#allocation2 + $0x85]]
    %v581 = vstv %s580
    %v582 = vmul.f32 %v581, %v562
    %v583 = vadd.f32 %v579, %v582
    %s584 = sld [smem:[#allocation2 + $0x86]]
    %v585 = vstv %s584
    %v586 = vmul.f32 %v585, %v576
    %v587 = vadd.f32 %v583, %v586
    %s588 = sld [smem:[#allocation2 + $0x8d]]
    %v589 = vstv %s588
    %v590 = vadd.f32 %v587, %v589
    %s591 = sld [smem:[#allocation2 + $0x87]]
    %v592 = vstv %s591
    %v593 = vmul.f32 %v592, %v548
    %s594 = sld [smem:[#allocation2 + $0x88]]
    %v595 = vstv %s594
    %v596 = vmul.f32 %v595, %v562
    %v597 = vadd.f32 %v593, %v596
    %s598 = sld [smem:[#allocation2 + $0x89]]
    %v599 = vstv %s598
    %v600 = vmul.f32 %v599, %v576
    %v601 = vadd.f32 %v597, %v600
    %s602 = sld [smem:[#allocation2 + $0x8e]]
    %v603 = vstv %s602
    %v604 = vadd.f32 %v601, %v603
    %s605 = sld [smem:[#allocation2 + $0x8a]]
    %v606 = vstv %s605
    %v607 = vmul.f32 %v606, %v548
    %s608 = sld [smem:[#allocation2 + $0x8b]]
    %v609 = vstv %s608
    %v610 = vmul.f32 %v609, %v562
    %v611 = vadd.f32 %v607, %v610
    %s612 = sld [smem:[#allocation2 + $0x8c]]
    %v613 = vstv %s612
    %v614 = vmul.f32 %v613, %v576
    %v615 = vadd.f32 %v611, %v614
    %s616 = sld [smem:[#allocation2 + $0x8f]]
    %v617 = vstv %s616
    %v618 = vadd.f32 %v615, %v617
    %v619 = vsub.f32 %v590, -8.0
    %v620 = vcvt.f32.s32.to.zero.pseudo %v619
    %v621 = vsub.f32 %v604, -8.0
    %v622 = vcvt.f32.s32.to.zero.pseudo %v621
    %v623 = vsub.f32 %v618, -8.0
    %v624 = vmul.f32 %v623, %v165
    %v625 = vcvt.f32.s32.to.zero.pseudo %v624
    %vm626 = vcmp.ge.s32.totalorder %v620, 0
    %vm627 = vcmp.lt.s32.totalorder %v620, 16
    %vm628 = vmand %vm626, %vm627
    %vm629 = vcmp.ge.s32.totalorder %v622, 0
    %vm630 = vmand %vm628, %vm629
    %vm631 = vcmp.lt.s32.totalorder %v622, 16
    %vm632 = vmand %vm630, %vm631
    %vm633 = vcmp.ge.s32.totalorder %v625, 0
    %vm634 = vmand %vm632, %vm633
    %vm635 = vcmp.lt.s32.totalorder %v625, 1
    %vm636 = vmand %vm634, %vm635
    %v637 = vadd.s32 %v625, 1
    %v638 = vmul.u32 %v637, 16
    %v639 = vadd.s32 %v638, %v620
    %v640 = vmul.u32 %v639, 16
    %v641 = vadd.s32 %v640, %v622
    %v642 = vsel %vm636, %v641, 4294967295
    %643 = vst.msk [vmem:[#allocation5 + $0x3] sm:$0x1] %vm184, %v642
    // Predicated region
    $region22: #{tpu_custom_call.1} parent=1 // pred_check
      _
    $region23: #{tpu_custom_call.1} parent=1 // pred_check_branch
      %645 = sbr.rel (0) target = $region25
    $region24: #{tpu_custom_call.1} parent=1 // pred_region
      %s647 = ssub.s32 64, 64
      %648 = vsyncadd [#allocation3], %s647
      %s650 = sshll.u32 [#allocation5], 4
      %s651 = int_to_ptr.vmem [resolvable:$true] %s650
      %653 = dma.vmem_to_hbm [thread:$0]  %s651, 64, %s4, [#allocation3]
    $region25: #{tpu_custom_call.1} parent=1 // pred_fallthru
      _
    // Predicated region
    $region26: #{tpu_custom_call.1} parent=1 // pred_check
      _
    $region27: #{tpu_custom_call.1} parent=1 // pred_check_branch
      %655 = sbr.rel (0) target = $region29
    $region28: #{tpu_custom_call.1} parent=1 // pred_region
      %656 = dma.done [#allocation3], 64
    $region29: #{tpu_custom_call.1} parent=1 // pred_fallthru
      _
    %657 = vsyncpa [#allocation3], 1
    %658 = vsyncpa [#allocation4], 1

</llo_original>
